<compile_context>
chip_gen: v6e
topology: v6e:2x2x1
jax: 0.10.0
libtpu: 0.0.40
codegen_flags: <defaults>
</compile_context>

<pallas_src>
import math
import jax
import jax.numpy as jnp
from jax.experimental import pallas as pl
from jax.experimental.pallas import tpu as pltpu

B, S, D = 2, 8, 32          # batch, sequence length, model dim
H = 4                        # heads
DK = D // H
D_FF = 64
EPS = 1e-5                   # torch.nn.LayerNorm default eps


def _layer_norm(v, g, b):
    mean = jnp.mean(v, axis=-1, keepdims=True)
    c = v - mean
    var = jnp.mean(c * c, axis=-1, keepdims=True)
    return c * jax.lax.rsqrt(var + EPS) * g + b


def make_encoder_kernel(n_layers):
    """n_layers is static; >1 fuses a clones()-style stack (identical params) into
    one kernel with the activation resident in VMEM between layers."""

    def kernel(x_ref, mask_ref, wqkv_ref, bqkv_ref, wo_ref,
               w1_ref, b1_ref, w2_ref, vec_ref, y_ref):
        x = x_ref[...]                                        # [B*S, D]

        # Additive mask computed ONCE: 0 where attend, -1e9 where masked.
        madd = jnp.where(mask_ref[...] == 0.0,
                         jnp.float32(-1e9), jnp.float32(0.0))  # [B, S, S]
        maddh = jnp.concatenate(
            [jnp.broadcast_to(madd[b][None], (H, S, S)) for b in range(B)],
            axis=0)                                           # [B*H, S, S]

        wqkv = wqkv_ref[...]
        bqkv = bqkv_ref[...]
        wo = wo_ref[...]
        w1 = w1_ref[...]
        b1 = b1_ref[...]
        w2 = w2_ref[...]
        vec = vec_ref[...]                                    # [6, D] packed params
        bo, b2 = vec[0:1], vec[1:2]
        g1, be1 = vec[2:3], vec[3:4]
        g2, be2 = vec[4:5], vec[5:6]

        scale = 1.0 / math.sqrt(DK)

        def split_heads(t):                                   # [B*S, D] -> [B*H, S, DK]
            parts = [t[b * S:(b + 1) * S, h * DK:(h + 1) * DK][None]
                     for b in range(B) for h in range(H)]
            return jnp.concatenate(parts, axis=0)

        def layer(xc):
            # ---- sublayer 1: self-attention, then residual + LayerNorm (post-LN) ----
            qkv = jnp.dot(xc, wqkv, preferred_element_type=jnp.float32) + bqkv
            qh = split_heads(qkv[:, 0 * D:1 * D])
            kh = split_heads(qkv[:, 1 * D:2 * D])
            vh = split_heads(qkv[:, 2 * D:3 * D])

            scores = jnp.einsum('nqd,nkd->nqk', qh, kh,
                                preferred_element_type=jnp.float32) * scale + maddh
            m = jnp.max(scores, axis=-1, keepdims=True)
            e = jnp.exp(scores - m)
            p = e * pl.reciprocal(jnp.sum(e, axis=-1, keepdims=True), approx=True)
            ctx = jnp.einsum('nqk,nkd->nqd', p, vh,
                             preferred_element_type=jnp.float32)   # [B*H, S, DK]
            # merge heads back into the flat [B*S, D] row layout
            ctx2d = jnp.concatenate(
                [jnp.concatenate([ctx[b * H + h] for h in range(H)], axis=-1)
                 for b in range(B)], axis=0)                       # [B*S, D]
            attn = jnp.dot(ctx2d, wo, preferred_element_type=jnp.float32) + bo
            x1 = _layer_norm(xc + attn, g1, be1)    # norm(x + dropout(sublayer(x)))

            # ---- sublayer 2: position-wise FFN, then residual + LayerNorm ----
            h1 = jnp.maximum(
                jnp.dot(x1, w1, preferred_element_type=jnp.float32) + b1, 0.0)
            ff = jnp.dot(h1, w2, preferred_element_type=jnp.float32) + b2
            return _layer_norm(x1 + ff, g2, be2)

        for _ in range(n_layers):     # static; n_layers=1 == EncoderLayer.forward
            x = layer(x)
        y_ref[...] = x

    return kernel


def encoder_layer_forward(x, mask, params, n_layers=1):
    """EncoderLayer.forward (default n_layers=1). Single pallas_call, no batch grid."""
    wqkv, bqkv, wo, w1, b1, w2, vec = params
    x_flat = x.reshape(B * S, D)      # fold batch into the matmul M dimension
    y_flat = pl.pallas_call(
        make_encoder_kernel(n_layers),
        out_shape=jax.ShapeDtypeStruct((B * S, D), jnp.float32),
        grid=(1,),
        in_specs=[
            pl.BlockSpec((B * S, D), lambda i: (0, 0)),       # x (flattened)
            pl.BlockSpec((B, S, S), lambda i: (0, 0, 0)),     # mask
            pl.BlockSpec((D, 3 * D), lambda i: (0, 0)),       # packed Wqkv
            pl.BlockSpec((1, 3 * D), lambda i: (0, 0)),       # packed bqkv
            pl.BlockSpec((D, D), lambda i: (0, 0)),           # Wo
            pl.BlockSpec((D, D_FF), lambda i: (0, 0)),        # W1
            pl.BlockSpec((1, D_FF), lambda i: (0, 0)),        # b1
            pl.BlockSpec((D_FF, D), lambda i: (0, 0)),        # W2
            pl.BlockSpec((6, D), lambda i: (0, 0)),           # packed [bo,b2,g1,be1,g2,be2]
        ],
        out_specs=pl.BlockSpec((B * S, D), lambda i: (0, 0)),
        compiler_params=pltpu.CompilerParams(dimension_semantics=("arbitrary",)),
    )(x_flat, mask, wqkv, bqkv, wo, w1, b1, w2, vec)
    return y_flat.reshape(B, S, D)


def init_layer_params(key):
    """Deterministic nn.Linear-style init; weights stored [in, out]; QKV/bias packed."""
    ks = jax.random.split(key, 6)

    def linear(k, din, dout):
        kw, kb = jax.random.split(k)
        lim = 1.0 / math.sqrt(din)
        w = jax.random.uniform(kw, (din, dout), jnp.float32, -lim, lim)
        b = jax.random.uniform(kb, (1, dout), jnp.float32, -lim, lim)
        return w, b

    wq, bq = linear(ks[0], D, D)
    wk, bk = linear(ks[1], D, D)
    wv, bv = linear(ks[2], D, D)
    wo, bo = linear(ks[3], D, D)
    w1, b1 = linear(ks[4], D, D_FF)
    w2, b2 = linear(ks[5], D_FF, D)
    wqkv = jnp.concatenate([wq, wk, wv], axis=1)              # [D, 3D]
    bqkv = jnp.concatenate([bq, bk, bv], axis=1)              # [1, 3D]
    g1, be1 = jnp.ones((1, D), jnp.float32), jnp.zeros((1, D), jnp.float32)
    g2, be2 = jnp.ones((1, D), jnp.float32), jnp.zeros((1, D), jnp.float32)
    vec = jnp.concatenate([bo, b2, g1, be1, g2, be2], axis=0)  # [6, D]
    return [wqkv, bqkv, wo, w1, b1, w2, vec]


if __name__ == "__main__":
    key = jax.random.PRNGKey(0)
    kx, kp = jax.random.split(key)
    x = jax.random.normal(kx, (B, S, D), jnp.float32)
    mask = jnp.ones((B, S, S), jnp.float32)   # all-ones mask: attend to everything
    params = init_layer_params(kp)

    out = encoder_layer_forward(x, mask, params)   # one EncoderLayer forward
    jax.block_until_ready(out)
    assert out.shape == (B, S, D) and out.dtype == jnp.float32
    assert bool(jnp.all(jnp.isfinite(out)))
    print("KERNEL_OK")
</pallas_src>

<mosaic_0001>
module attributes {stable_mosaic.version = 11 : i64} {
  func.func @kernel(%arg0: i32, %arg1: memref<16x32xf32, #tpu.memory_space<vmem>>, %arg2: memref<2x8x8xf32, #tpu.memory_space<vmem>>, %arg3: memref<32x96xf32, #tpu.memory_space<vmem>>, %arg4: memref<1x96xf32, #tpu.memory_space<vmem>>, %arg5: memref<32x32xf32, #tpu.memory_space<vmem>>, %arg6: memref<32x64xf32, #tpu.memory_space<vmem>>, %arg7: memref<1x64xf32, #tpu.memory_space<vmem>>, %arg8: memref<64x32xf32, #tpu.memory_space<vmem>>, %arg9: memref<6x32xf32, #tpu.memory_space<vmem>>, %arg10: memref<16x32xf32, #tpu.memory_space<vmem>>) attributes {dimension_semantics = [#tpu.dimension_semantics<arbitrary>], iteration_bounds = array<i64: 1>, scalar_prefetch = 0 : i64, scratch_operands = 0 : i64, tpu.core_type = #tpu.core_type<tc>, window_params = [{pipeline_mode = #tpu.pipeline_mode<synchronous>, transform_indices = @transform_0, window_bounds = array<i64: 16, 32>}, {pipeline_mode = #tpu.pipeline_mode<synchronous>, transform_indices = @transform_1, window_bounds = array<i64: 2, 8, 8>}, {pipeline_mode = #tpu.pipeline_mode<synchronous>, transform_indices = @transform_2, window_bounds = array<i64: 32, 96>}, {pipeline_mode = #tpu.pipeline_mode<synchronous>, transform_indices = @transform_3, window_bounds = array<i64: 1, 96>}, {pipeline_mode = #tpu.pipeline_mode<synchronous>, transform_indices = @transform_4, window_bounds = array<i64: 32, 32>}, {pipeline_mode = #tpu.pipeline_mode<synchronous>, transform_indices = @transform_5, window_bounds = array<i64: 32, 64>}, {pipeline_mode = #tpu.pipeline_mode<synchronous>, transform_indices = @transform_6, window_bounds = array<i64: 1, 64>}, {pipeline_mode = #tpu.pipeline_mode<synchronous>, transform_indices = @transform_7, window_bounds = array<i64: 64, 32>}, {pipeline_mode = #tpu.pipeline_mode<synchronous>, transform_indices = @transform_8, window_bounds = array<i64: 6, 32>}, {pipeline_mode = #tpu.pipeline_mode<synchronous>, transform_indices = @transform_9, window_bounds = array<i64: 16, 32>}]} {
    %c0 = arith.constant 0 : index
    %c0_0 = arith.constant 0 : index
    %0 = vector.load %arg1[%c0, %c0_0] : memref<16x32xf32, #tpu.memory_space<vmem>>, vector<16x32xf32>
    %c0_1 = arith.constant 0 : index
    %c0_2 = arith.constant 0 : index
    %c0_3 = arith.constant 0 : index
    %1 = vector.load %arg2[%c0_1, %c0_2, %c0_3] : memref<2x8x8xf32, #tpu.memory_space<vmem>>, vector<2x8x8xf32>
    %cst = arith.constant 0.000000e+00 : f32
    %2 = vector.broadcast %cst : f32 to vector<2x8x8xf32>
    %3 = arith.cmpf oeq, %1, %2 : vector<2x8x8xf32>
    %cst_4 = arith.constant -1.000000e+09 : f32
    %cst_5 = arith.constant 0.000000e+00 : f32
    %4 = vector.broadcast %cst_4 : f32 to vector<2x8x8xf32>
    %5 = vector.broadcast %cst_5 : f32 to vector<2x8x8xf32>
    %6 = arith.select %3, %4, %5 : vector<2x8x8xi1>, vector<2x8x8xf32>
    %7 = vector.extract_strided_slice %6 {offsets = [0, 0, 0], sizes = [1, 8, 8], strides = [1, 1, 1]} : vector<2x8x8xf32> to vector<1x8x8xf32>
    %8 = vector.shape_cast %7 : vector<1x8x8xf32> to vector<8x8xf32>
    %9 = vector.shape_cast %8 : vector<8x8xf32> to vector<1x8x8xf32>
    %10 = vector.shape_cast %9 : vector<1x8x8xf32> to vector<1x8x8xf32>
    %11 = vector.broadcast %10 : vector<1x8x8xf32> to vector<4x8x8xf32>
    %12 = vector.extract_strided_slice %6 {offsets = [1, 0, 0], sizes = [1, 8, 8], strides = [1, 1, 1]} : vector<2x8x8xf32> to vector<1x8x8xf32>
    %13 = vector.shape_cast %12 : vector<1x8x8xf32> to vector<8x8xf32>
    %14 = vector.shape_cast %13 : vector<8x8xf32> to vector<1x8x8xf32>
    %15 = vector.shape_cast %14 : vector<1x8x8xf32> to vector<1x8x8xf32>
    %16 = vector.broadcast %15 : vector<1x8x8xf32> to vector<4x8x8xf32>
    %17 = tpu.concatenate %11, %16 in 0 : vector<4x8x8xf32>, vector<4x8x8xf32> -> vector<8x8x8xf32>
    %c0_6 = arith.constant 0 : index
    %c0_7 = arith.constant 0 : index
    %18 = vector.load %arg3[%c0_6, %c0_7] : memref<32x96xf32, #tpu.memory_space<vmem>>, vector<32x96xf32>
    %c0_8 = arith.constant 0 : index
    %c0_9 = arith.constant 0 : index
    %19 = vector.load %arg4[%c0_8, %c0_9] : memref<1x96xf32, #tpu.memory_space<vmem>>, vector<1x96xf32>
    %c0_10 = arith.constant 0 : index
    %c0_11 = arith.constant 0 : index
    %20 = vector.load %arg5[%c0_10, %c0_11] : memref<32x32xf32, #tpu.memory_space<vmem>>, vector<32x32xf32>
    %c0_12 = arith.constant 0 : index
    %c0_13 = arith.constant 0 : index
    %21 = vector.load %arg6[%c0_12, %c0_13] : memref<32x64xf32, #tpu.memory_space<vmem>>, vector<32x64xf32>
    %c0_14 = arith.constant 0 : index
    %c0_15 = arith.constant 0 : index
    %22 = vector.load %arg7[%c0_14, %c0_15] : memref<1x64xf32, #tpu.memory_space<vmem>>, vector<1x64xf32>
    %c0_16 = arith.constant 0 : index
    %c0_17 = arith.constant 0 : index
    %23 = vector.load %arg8[%c0_16, %c0_17] : memref<64x32xf32, #tpu.memory_space<vmem>>, vector<64x32xf32>
    %c0_18 = arith.constant 0 : index
    %c0_19 = arith.constant 0 : index
    %24 = vector.load %arg9[%c0_18, %c0_19] : memref<6x32xf32, #tpu.memory_space<vmem>>, vector<6x32xf32>
    %25 = vector.extract_strided_slice %24 {offsets = [0, 0], sizes = [1, 32], strides = [1, 1]} : vector<6x32xf32> to vector<1x32xf32>
    %26 = vector.extract_strided_slice %24 {offsets = [1, 0], sizes = [1, 32], strides = [1, 1]} : vector<6x32xf32> to vector<1x32xf32>
    %27 = vector.extract_strided_slice %24 {offsets = [2, 0], sizes = [1, 32], strides = [1, 1]} : vector<6x32xf32> to vector<1x32xf32>
    %28 = vector.extract_strided_slice %24 {offsets = [3, 0], sizes = [1, 32], strides = [1, 1]} : vector<6x32xf32> to vector<1x32xf32>
    %29 = vector.extract_strided_slice %24 {offsets = [4, 0], sizes = [1, 32], strides = [1, 1]} : vector<6x32xf32> to vector<1x32xf32>
    %30 = vector.extract_strided_slice %24 {offsets = [5, 0], sizes = [1, 32], strides = [1, 1]} : vector<6x32xf32> to vector<1x32xf32>
    %cst_20 = arith.constant dense<0.000000e+00> : vector<16x96xf32>
    %31 = tpu.matmul %0, %18, %cst_20 {dimension_numbers = #tpu.dot_dimension_numbers<[1], [0], [0], [1], [0, 0, 1, 1], [], []>} : vector<16x32xf32>, vector<32x96xf32>, vector<16x96xf32> -> vector<16x96xf32>
    %32 = vector.broadcast %19 : vector<1x96xf32> to vector<16x96xf32>
    %33 = arith.addf %31, %32 : vector<16x96xf32>
    %34 = vector.extract_strided_slice %33 {offsets = [0, 0], sizes = [16, 32], strides = [1, 1]} : vector<16x96xf32> to vector<16x32xf32>
    %35 = vector.extract_strided_slice %34 {offsets = [0, 0], sizes = [8, 8], strides = [1, 1]} : vector<16x32xf32> to vector<8x8xf32>
    %36 = vector.shape_cast %35 : vector<8x8xf32> to vector<1x8x8xf32>
    %37 = vector.extract_strided_slice %34 {offsets = [0, 8], sizes = [8, 8], strides = [1, 1]} : vector<16x32xf32> to vector<8x8xf32>
    %38 = vector.shape_cast %37 : vector<8x8xf32> to vector<1x8x8xf32>
    %39 = vector.extract_strided_slice %34 {offsets = [0, 16], sizes = [8, 8], strides = [1, 1]} : vector<16x32xf32> to vector<8x8xf32>
    %40 = vector.shape_cast %39 : vector<8x8xf32> to vector<1x8x8xf32>
    %41 = vector.extract_strided_slice %34 {offsets = [0, 24], sizes = [8, 8], strides = [1, 1]} : vector<16x32xf32> to vector<8x8xf32>
    %42 = vector.shape_cast %41 : vector<8x8xf32> to vector<1x8x8xf32>
    %43 = vector.extract_strided_slice %34 {offsets = [8, 0], sizes = [8, 8], strides = [1, 1]} : vector<16x32xf32> to vector<8x8xf32>
    %44 = vector.shape_cast %43 : vector<8x8xf32> to vector<1x8x8xf32>
    %45 = vector.extract_strided_slice %34 {offsets = [8, 8], sizes = [8, 8], strides = [1, 1]} : vector<16x32xf32> to vector<8x8xf32>
    %46 = vector.shape_cast %45 : vector<8x8xf32> to vector<1x8x8xf32>
    %47 = vector.extract_strided_slice %34 {offsets = [8, 16], sizes = [8, 8], strides = [1, 1]} : vector<16x32xf32> to vector<8x8xf32>
    %48 = vector.shape_cast %47 : vector<8x8xf32> to vector<1x8x8xf32>
    %49 = vector.extract_strided_slice %34 {offsets = [8, 24], sizes = [8, 8], strides = [1, 1]} : vector<16x32xf32> to vector<8x8xf32>
    %50 = vector.shape_cast %49 : vector<8x8xf32> to vector<1x8x8xf32>
    %51 = tpu.concatenate %36, %38, %40, %42, %44, %46, %48, %50 in 0 : vector<1x8x8xf32>, vector<1x8x8xf32>, vector<1x8x8xf32>, vector<1x8x8xf32>, vector<1x8x8xf32>, vector<1x8x8xf32>, vector<1x8x8xf32>, vector<1x8x8xf32> -> vector<8x8x8xf32>
    %52 = vector.extract_strided_slice %33 {offsets = [0, 32], sizes = [16, 32], strides = [1, 1]} : vector<16x96xf32> to vector<16x32xf32>
    %53 = vector.extract_strided_slice %52 {offsets = [0, 0], sizes = [8, 8], strides = [1, 1]} : vector<16x32xf32> to vector<8x8xf32>
    %54 = vector.shape_cast %53 : vector<8x8xf32> to vector<1x8x8xf32>
    %55 = vector.extract_strided_slice %52 {offsets = [0, 8], sizes = [8, 8], strides = [1, 1]} : vector<16x32xf32> to vector<8x8xf32>
    %56 = vector.shape_cast %55 : vector<8x8xf32> to vector<1x8x8xf32>
    %57 = vector.extract_strided_slice %52 {offsets = [0, 16], sizes = [8, 8], strides = [1, 1]} : vector<16x32xf32> to vector<8x8xf32>
    %58 = vector.shape_cast %57 : vector<8x8xf32> to vector<1x8x8xf32>
    %59 = vector.extract_strided_slice %52 {offsets = [0, 24], sizes = [8, 8], strides = [1, 1]} : vector<16x32xf32> to vector<8x8xf32>
    %60 = vector.shape_cast %59 : vector<8x8xf32> to vector<1x8x8xf32>
    %61 = vector.extract_strided_slice %52 {offsets = [8, 0], sizes = [8, 8], strides = [1, 1]} : vector<16x32xf32> to vector<8x8xf32>
    %62 = vector.shape_cast %61 : vector<8x8xf32> to vector<1x8x8xf32>
    %63 = vector.extract_strided_slice %52 {offsets = [8, 8], sizes = [8, 8], strides = [1, 1]} : vector<16x32xf32> to vector<8x8xf32>
    %64 = vector.shape_cast %63 : vector<8x8xf32> to vector<1x8x8xf32>
    %65 = vector.extract_strided_slice %52 {offsets = [8, 16], sizes = [8, 8], strides = [1, 1]} : vector<16x32xf32> to vector<8x8xf32>
    %66 = vector.shape_cast %65 : vector<8x8xf32> to vector<1x8x8xf32>
    %67 = vector.extract_strided_slice %52 {offsets = [8, 24], sizes = [8, 8], strides = [1, 1]} : vector<16x32xf32> to vector<8x8xf32>
    %68 = vector.shape_cast %67 : vector<8x8xf32> to vector<1x8x8xf32>
    %69 = tpu.concatenate %54, %56, %58, %60, %62, %64, %66, %68 in 0 : vector<1x8x8xf32>, vector<1x8x8xf32>, vector<1x8x8xf32>, vector<1x8x8xf32>, vector<1x8x8xf32>, vector<1x8x8xf32>, vector<1x8x8xf32>, vector<1x8x8xf32> -> vector<8x8x8xf32>
    %70 = vector.extract_strided_slice %33 {offsets = [0, 64], sizes = [16, 32], strides = [1, 1]} : vector<16x96xf32> to vector<16x32xf32>
    %71 = vector.extract_strided_slice %70 {offsets = [0, 0], sizes = [8, 8], strides = [1, 1]} : vector<16x32xf32> to vector<8x8xf32>
    %72 = vector.shape_cast %71 : vector<8x8xf32> to vector<1x8x8xf32>
    %73 = vector.extract_strided_slice %70 {offsets = [0, 8], sizes = [8, 8], strides = [1, 1]} : vector<16x32xf32> to vector<8x8xf32>
    %74 = vector.shape_cast %73 : vector<8x8xf32> to vector<1x8x8xf32>
    %75 = vector.extract_strided_slice %70 {offsets = [0, 16], sizes = [8, 8], strides = [1, 1]} : vector<16x32xf32> to vector<8x8xf32>
    %76 = vector.shape_cast %75 : vector<8x8xf32> to vector<1x8x8xf32>
    %77 = vector.extract_strided_slice %70 {offsets = [0, 24], sizes = [8, 8], strides = [1, 1]} : vector<16x32xf32> to vector<8x8xf32>
    %78 = vector.shape_cast %77 : vector<8x8xf32> to vector<1x8x8xf32>
    %79 = vector.extract_strided_slice %70 {offsets = [8, 0], sizes = [8, 8], strides = [1, 1]} : vector<16x32xf32> to vector<8x8xf32>
    %80 = vector.shape_cast %79 : vector<8x8xf32> to vector<1x8x8xf32>
    %81 = vector.extract_strided_slice %70 {offsets = [8, 8], sizes = [8, 8], strides = [1, 1]} : vector<16x32xf32> to vector<8x8xf32>
    %82 = vector.shape_cast %81 : vector<8x8xf32> to vector<1x8x8xf32>
    %83 = vector.extract_strided_slice %70 {offsets = [8, 16], sizes = [8, 8], strides = [1, 1]} : vector<16x32xf32> to vector<8x8xf32>
    %84 = vector.shape_cast %83 : vector<8x8xf32> to vector<1x8x8xf32>
    %85 = vector.extract_strided_slice %70 {offsets = [8, 24], sizes = [8, 8], strides = [1, 1]} : vector<16x32xf32> to vector<8x8xf32>
    %86 = vector.shape_cast %85 : vector<8x8xf32> to vector<1x8x8xf32>
    %87 = tpu.concatenate %72, %74, %76, %78, %80, %82, %84, %86 in 0 : vector<1x8x8xf32>, vector<1x8x8xf32>, vector<1x8x8xf32>, vector<1x8x8xf32>, vector<1x8x8xf32>, vector<1x8x8xf32>, vector<1x8x8xf32>, vector<1x8x8xf32> -> vector<8x8x8xf32>
    "tpu.trace_start"() <{level = 10 : i32, message = "nqd,nkd->nqk"}> : () -> ()
    %cst_21 = arith.constant dense<0.000000e+00> : vector<8x8x8xf32>
    %88 = tpu.matmul %51, %69, %cst_21 {dimension_numbers = #tpu.dot_dimension_numbers<[2], [2], [1], [1], [0, 0, 0, 1, 1, 1], [0], [0]>} : vector<8x8x8xf32>, vector<8x8x8xf32>, vector<8x8x8xf32> -> vector<8x8x8xf32>
    "tpu.trace_stop"() : () -> ()
    %cst_22 = arith.constant 0.353553385 : f32
    %89 = vector.broadcast %cst_22 : f32 to vector<8x8x8xf32>
    %90 = arith.mulf %88, %89 : vector<8x8x8xf32>
    %91 = arith.addf %90, %17 : vector<8x8x8xf32>
    %cst_23 = arith.constant dense<0xFF800000> : vector<8x8xf32>
    %92 = vector.multi_reduction <maximumf>, %91, %cst_23 [2] : vector<8x8x8xf32> to vector<8x8xf32>
    %93 = vector.shape_cast %92 : vector<8x8xf32> to vector<8x8x1xf32>
    %94 = vector.broadcast %93 : vector<8x8x1xf32> to vector<8x8x8xf32>
    %95 = arith.subf %91, %94 : vector<8x8x8xf32>
    %96 = math.exp %95 : vector<8x8x8xf32>
    %cst_24 = arith.constant dense<0.000000e+00> : vector<8x8xf32>
    %97 = vector.multi_reduction <add>, %96, %cst_24 [2] : vector<8x8x8xf32> to vector<8x8xf32>
    %98 = vector.shape_cast %97 : vector<8x8xf32> to vector<8x8x1xf32>
    %99 = tpu.reciprocal %98 {approx = true} : vector<8x8x1xf32> -> vector<8x8x1xf32>
    %100 = vector.broadcast %99 : vector<8x8x1xf32> to vector<8x8x8xf32>
    %101 = arith.mulf %96, %100 : vector<8x8x8xf32>
    "tpu.trace_start"() <{level = 10 : i32, message = "nqk,nkd->nqd"}> : () -> ()
    %cst_25 = arith.constant dense<0.000000e+00> : vector<8x8x8xf32>
    %102 = tpu.matmul %101, %87, %cst_25 {dimension_numbers = #tpu.dot_dimension_numbers<[2], [1], [1], [2], [0, 0, 0, 1, 1, 2], [0], [0]>} : vector<8x8x8xf32>, vector<8x8x8xf32>, vector<8x8x8xf32> -> vector<8x8x8xf32>
    "tpu.trace_stop"() : () -> ()
    %103 = vector.extract_strided_slice %102 {offsets = [0, 0, 0], sizes = [1, 8, 8], strides = [1, 1, 1]} : vector<8x8x8xf32> to vector<1x8x8xf32>
    %104 = vector.shape_cast %103 : vector<1x8x8xf32> to vector<8x8xf32>
    %105 = vector.extract_strided_slice %102 {offsets = [1, 0, 0], sizes = [1, 8, 8], strides = [1, 1, 1]} : vector<8x8x8xf32> to vector<1x8x8xf32>
    %106 = vector.shape_cast %105 : vector<1x8x8xf32> to vector<8x8xf32>
    %107 = vector.extract_strided_slice %102 {offsets = [2, 0, 0], sizes = [1, 8, 8], strides = [1, 1, 1]} : vector<8x8x8xf32> to vector<1x8x8xf32>
    %108 = vector.shape_cast %107 : vector<1x8x8xf32> to vector<8x8xf32>
    %109 = vector.extract_strided_slice %102 {offsets = [3, 0, 0], sizes = [1, 8, 8], strides = [1, 1, 1]} : vector<8x8x8xf32> to vector<1x8x8xf32>
    %110 = vector.shape_cast %109 : vector<1x8x8xf32> to vector<8x8xf32>
    %111 = tpu.concatenate %104, %106, %108, %110 in 1 : vector<8x8xf32>, vector<8x8xf32>, vector<8x8xf32>, vector<8x8xf32> -> vector<8x32xf32>
    %112 = vector.extract_strided_slice %102 {offsets = [4, 0, 0], sizes = [1, 8, 8], strides = [1, 1, 1]} : vector<8x8x8xf32> to vector<1x8x8xf32>
    %113 = vector.shape_cast %112 : vector<1x8x8xf32> to vector<8x8xf32>
    %114 = vector.extract_strided_slice %102 {offsets = [5, 0, 0], sizes = [1, 8, 8], strides = [1, 1, 1]} : vector<8x8x8xf32> to vector<1x8x8xf32>
    %115 = vector.shape_cast %114 : vector<1x8x8xf32> to vector<8x8xf32>
    %116 = vector.extract_strided_slice %102 {offsets = [6, 0, 0], sizes = [1, 8, 8], strides = [1, 1, 1]} : vector<8x8x8xf32> to vector<1x8x8xf32>
    %117 = vector.shape_cast %116 : vector<1x8x8xf32> to vector<8x8xf32>
    %118 = vector.extract_strided_slice %102 {offsets = [7, 0, 0], sizes = [1, 8, 8], strides = [1, 1, 1]} : vector<8x8x8xf32> to vector<1x8x8xf32>
    %119 = vector.shape_cast %118 : vector<1x8x8xf32> to vector<8x8xf32>
    %120 = tpu.concatenate %113, %115, %117, %119 in 1 : vector<8x8xf32>, vector<8x8xf32>, vector<8x8xf32>, vector<8x8xf32> -> vector<8x32xf32>
    %121 = tpu.concatenate %111, %120 in 0 : vector<8x32xf32>, vector<8x32xf32> -> vector<16x32xf32>
    %cst_26 = arith.constant dense<0.000000e+00> : vector<16x32xf32>
    %122 = tpu.matmul %121, %20, %cst_26 {dimension_numbers = #tpu.dot_dimension_numbers<[1], [0], [0], [1], [0, 0, 1, 1], [], []>} : vector<16x32xf32>, vector<32x32xf32>, vector<16x32xf32> -> vector<16x32xf32>
    %123 = vector.broadcast %25 : vector<1x32xf32> to vector<16x32xf32>
    %124 = arith.addf %122, %123 : vector<16x32xf32>
    %125 = arith.addf %0, %124 : vector<16x32xf32>
    %cst_27 = arith.constant dense<0.000000e+00> : vector<16xf32>
    %126 = vector.multi_reduction <add>, %125, %cst_27 [1] : vector<16x32xf32> to vector<16xf32>
    %127 = vector.shape_cast %126 : vector<16xf32> to vector<16x1xf32>
    %cst_28 = arith.constant 3.200000e+01 : f32
    %128 = vector.broadcast %cst_28 : f32 to vector<16x1xf32>
    %129 = arith.divf %127, %128 : vector<16x1xf32>
    %130 = vector.broadcast %129 : vector<16x1xf32> to vector<16x32xf32>
    %131 = arith.subf %125, %130 : vector<16x32xf32>
    %132 = arith.mulf %131, %131 : vector<16x32xf32>
    %cst_29 = arith.constant dense<0.000000e+00> : vector<16xf32>
    %133 = vector.multi_reduction <add>, %132, %cst_29 [1] : vector<16x32xf32> to vector<16xf32>
    %134 = vector.shape_cast %133 : vector<16xf32> to vector<16x1xf32>
    %cst_30 = arith.constant 3.200000e+01 : f32
    %135 = vector.broadcast %cst_30 : f32 to vector<16x1xf32>
    %136 = arith.divf %134, %135 : vector<16x1xf32>
    %cst_31 = arith.constant 9.99999974E-6 : f32
    %137 = vector.broadcast %cst_31 : f32 to vector<16x1xf32>
    %138 = arith.addf %136, %137 : vector<16x1xf32>
    %139 = math.rsqrt %138 : vector<16x1xf32>
    %140 = vector.broadcast %139 : vector<16x1xf32> to vector<16x32xf32>
    %141 = arith.mulf %131, %140 : vector<16x32xf32>
    %142 = vector.broadcast %27 : vector<1x32xf32> to vector<16x32xf32>
    %143 = arith.mulf %141, %142 : vector<16x32xf32>
    %144 = vector.broadcast %28 : vector<1x32xf32> to vector<16x32xf32>
    %145 = arith.addf %143, %144 : vector<16x32xf32>
    %cst_32 = arith.constant dense<0.000000e+00> : vector<16x64xf32>
    %146 = tpu.matmul %145, %21, %cst_32 {dimension_numbers = #tpu.dot_dimension_numbers<[1], [0], [0], [1], [0, 0, 1, 1], [], []>} : vector<16x32xf32>, vector<32x64xf32>, vector<16x64xf32> -> vector<16x64xf32>
    %147 = vector.broadcast %22 : vector<1x64xf32> to vector<16x64xf32>
    %148 = arith.addf %146, %147 : vector<16x64xf32>
    %cst_33 = arith.constant 0.000000e+00 : f32
    %149 = vector.broadcast %cst_33 : f32 to vector<16x64xf32>
    %150 = arith.maximumf %148, %149 : vector<16x64xf32>
    %cst_34 = arith.constant dense<0.000000e+00> : vector<16x32xf32>
    %151 = tpu.matmul %150, %23, %cst_34 {dimension_numbers = #tpu.dot_dimension_numbers<[1], [0], [0], [1], [0, 0, 1, 1], [], []>} : vector<16x64xf32>, vector<64x32xf32>, vector<16x32xf32> -> vector<16x32xf32>
    %152 = vector.broadcast %26 : vector<1x32xf32> to vector<16x32xf32>
    %153 = arith.addf %151, %152 : vector<16x32xf32>
    %154 = arith.addf %145, %153 : vector<16x32xf32>
    %cst_35 = arith.constant dense<0.000000e+00> : vector<16xf32>
    %155 = vector.multi_reduction <add>, %154, %cst_35 [1] : vector<16x32xf32> to vector<16xf32>
    %156 = vector.shape_cast %155 : vector<16xf32> to vector<16x1xf32>
    %cst_36 = arith.constant 3.200000e+01 : f32
    %157 = vector.broadcast %cst_36 : f32 to vector<16x1xf32>
    %158 = arith.divf %156, %157 : vector<16x1xf32>
    %159 = vector.broadcast %158 : vector<16x1xf32> to vector<16x32xf32>
    %160 = arith.subf %154, %159 : vector<16x32xf32>
    %161 = arith.mulf %160, %160 : vector<16x32xf32>
    %cst_37 = arith.constant dense<0.000000e+00> : vector<16xf32>
    %162 = vector.multi_reduction <add>, %161, %cst_37 [1] : vector<16x32xf32> to vector<16xf32>
    %163 = vector.shape_cast %162 : vector<16xf32> to vector<16x1xf32>
    %cst_38 = arith.constant 3.200000e+01 : f32
    %164 = vector.broadcast %cst_38 : f32 to vector<16x1xf32>
    %165 = arith.divf %163, %164 : vector<16x1xf32>
    %cst_39 = arith.constant 9.99999974E-6 : f32
    %166 = vector.broadcast %cst_39 : f32 to vector<16x1xf32>
    %167 = arith.addf %165, %166 : vector<16x1xf32>
    %168 = math.rsqrt %167 : vector<16x1xf32>
    %169 = vector.broadcast %168 : vector<16x1xf32> to vector<16x32xf32>
    %170 = arith.mulf %160, %169 : vector<16x32xf32>
    %171 = vector.broadcast %29 : vector<1x32xf32> to vector<16x32xf32>
    %172 = arith.mulf %170, %171 : vector<16x32xf32>
    %173 = vector.broadcast %30 : vector<1x32xf32> to vector<16x32xf32>
    %174 = arith.addf %172, %173 : vector<16x32xf32>
    %c0_40 = arith.constant 0 : index
    %c0_41 = arith.constant 0 : index
    %175 = vector.load %arg10[%c0_40, %c0_41] : memref<16x32xf32, #tpu.memory_space<vmem>>, vector<16x32xf32>
    tpu.vector_store %arg10[%c0_40, %c0_41], %174 {strides = array<i32>} : memref<16x32xf32, #tpu.memory_space<vmem>>, vector<16x32xf32>,
    return
  }
  func.func @transform_0(%arg0: i32) -> (i32, i32) {
    %c0_i32 = arith.constant 0 : i32
    %c0_i32_0 = arith.constant 0 : i32
    %c0_i32_1 = arith.constant 0 : i32
    return %c0_i32, %c0_i32_0 : i32, i32
  }
  func.func @transform_1(%arg0: i32) -> (i32, i32, i32) {
    %c0_i32 = arith.constant 0 : i32
    %c0_i32_0 = arith.constant 0 : i32
    %c0_i32_1 = arith.constant 0 : i32
    %c0_i32_2 = arith.constant 0 : i32
    return %c0_i32, %c0_i32_0, %c0_i32_1 : i32, i32, i32
  }
  func.func @transform_2(%arg0: i32) -> (i32, i32) {
    %c0_i32 = arith.constant 0 : i32
    %c0_i32_0 = arith.constant 0 : i32
    %c0_i32_1 = arith.constant 0 : i32
    return %c0_i32, %c0_i32_0 : i32, i32
  }
  func.func @transform_3(%arg0: i32) -> (i32, i32) {
    %c0_i32 = arith.constant 0 : i32
    %c0_i32_0 = arith.constant 0 : i32
    %c0_i32_1 = arith.constant 0 : i32
    return %c0_i32, %c0_i32_0 : i32, i32
  }
  func.func @transform_4(%arg0: i32) -> (i32, i32) {
    %c0_i32 = arith.constant 0 : i32
    %c0_i32_0 = arith.constant 0 : i32
    %c0_i32_1 = arith.constant 0 : i32
    return %c0_i32, %c0_i32_0 : i32, i32
  }
  func.func @transform_5(%arg0: i32) -> (i32, i32) {
    %c0_i32 = arith.constant 0 : i32
    %c0_i32_0 = arith.constant 0 : i32
    %c0_i32_1 = arith.constant 0 : i32
    return %c0_i32, %c0_i32_0 : i32, i32
  }
  func.func @transform_6(%arg0: i32) -> (i32, i32) {
    %c0_i32 = arith.constant 0 : i32
    %c0_i32_0 = arith.constant 0 : i32
    %c0_i32_1 = arith.constant 0 : i32
    return %c0_i32, %c0_i32_0 : i32, i32
  }
  func.func @transform_7(%arg0: i32) -> (i32, i32) {
    %c0_i32 = arith.constant 0 : i32
    %c0_i32_0 = arith.constant 0 : i32
    %c0_i32_1 = arith.constant 0 : i32
    return %c0_i32, %c0_i32_0 : i32, i32
  }
  func.func @transform_8(%arg0: i32) -> (i32, i32) {
    %c0_i32 = arith.constant 0 : i32
    %c0_i32_0 = arith.constant 0 : i32
    %c0_i32_1 = arith.constant 0 : i32
    return %c0_i32, %c0_i32_0 : i32, i32
  }
  func.func @transform_9(%arg0: i32) -> (i32, i32) {
    %c0_i32 = arith.constant 0 : i32
    %c0_i32_0 = arith.constant 0 : i32
    %c0_i32_1 = arith.constant 0 : i32
    return %c0_i32, %c0_i32_0 : i32, i32
  }
}

</mosaic_0001>

<llo_original>
// kernel: tpu_custom_call.1
$region0: #{tpu_custom_call.1}
  #allocation0 [shape = 'u32[]', space=smem, size = 0x4, offset = 0x4, fixed_abs, tag = 'smem constant byte address 0x4 - core index']
  #allocation1 [shape = 'u32[144,128]{1,0:T(1,128)}', space=vmem, size = 0x12000, scoped, tag = 'internal scratch']
  %s0 = inlined_call_operand.hbm [shape: f32[16,32], index: 0, kind: input, shape index: {}]
  %s1 = inlined_call_operand.hbm [shape: f32[2,8,8], index: 1, kind: input, shape index: {}]
  %s2 = inlined_call_operand.vmem [shape: f32[32,96], index: 2, kind: input, shape index: {}]
  %s3 = inlined_call_operand.vmem [shape: f32[1,96], index: 3, kind: input, shape index: {}]
  %s4 = inlined_call_operand.vmem [shape: f32[32,32], index: 4, kind: input, shape index: {}]
  %s5 = inlined_call_operand.vmem [shape: f32[32,64], index: 5, kind: input, shape index: {}]
  %s6 = inlined_call_operand.vmem [shape: f32[1,64], index: 6, kind: input, shape index: {}]
  %s7 = inlined_call_operand.vmem [shape: f32[64,32], index: 7, kind: input, shape index: {}]
  %s8 = inlined_call_operand.vmem [shape: f32[6,32], index: 8, kind: input, shape index: {}]
  %s9 = inlined_call_operand.hbm [shape: f32[16,32], index: 9, kind: output, shape index: {}]
  %s10 = sld [smem:[#allocation0]]
  $region54: #{tpu_custom_call.1} parent=0
    _
  %s12 = ssub.s32 1, %s10
  %s13 = scalar_select 0, %s12, %s10
  $region1: #{tpu_custom_call.1} parent=0
    #allocation2 [shape = 'u8[8192]{0}', space=vmem, size = 0x2000, scoped, tag = 'input window, operand 0, single buffered']
    #allocation3 [shape = 's32[1]{0}', space=sflag, size = 0x4, scoped, tag = 'scoped memory for tpu_custom_call.1']
    #allocation4 [shape = 's32[1]{0}', space=sflag, size = 0x4, scoped, tag = 'scoped memory for tpu_custom_call.1']
    #allocation5 [shape = 'u8[8192]{0}', space=vmem, size = 0x2000, scoped, tag = 'input window, operand 1, single buffered']
    #allocation6 [shape = 's32[1]{0}', space=sflag, size = 0x4, scoped, tag = 'scoped memory for tpu_custom_call.1']
    #allocation7 [shape = 'u8[8192]{0}', space=vmem, size = 0x2000, scoped, tag = 'output window, operand 0, single buffered']
    %14 = vsyncpa [#allocation3], 0
    %15 = vsyncpa [#allocation6], 0
    %16 = vsyncpa [#allocation4], 0
    // Predicated region
    $region2: #{tpu_custom_call.1} parent=1 // pred_check
      _
    $region3: #{tpu_custom_call.1} parent=1 // pred_check_branch
      %18 = sbr.rel (0) target = $region5
    $region4: #{tpu_custom_call.1} parent=1 // pred_region
      %s20 = ssub.s32 256, 256
      %21 = vsyncadd [#allocation3], %s20
      %s22 = sshll.u32 [#allocation2], 4
      %s23 = int_to_ptr.vmem [resolvable:$true] %s22
      %28 = dma.hbm_to_vmem [thread:$0]  %s0, 256, %s23, [#allocation3], 128, 128, 8
    $region5: #{tpu_custom_call.1} parent=1 // pred_fallthru
      _
    // Predicated region
    $region6: #{tpu_custom_call.1} parent=1 // pred_check
      _
    $region7: #{tpu_custom_call.1} parent=1 // pred_check_branch
      %30 = sbr.rel (0) target = $region9
    $region8: #{tpu_custom_call.1} parent=1 // pred_region
      %s32 = ssub.s32 256, 256
      %33 = vsyncadd [#allocation6], %s32
      %s34 = sshll.u32 [#allocation5], 4
      %s35 = int_to_ptr.vmem [resolvable:$true] %s34
      %40 = dma.hbm_to_vmem [thread:$0]  %s1, 256, %s35, [#allocation6], 128, 128, 8
    $region9: #{tpu_custom_call.1} parent=1 // pred_fallthru
      _
    // Predicated region
    $region10: #{tpu_custom_call.1} parent=1 // pred_check
      _
    $region11: #{tpu_custom_call.1} parent=1 // pred_check_branch
      %42 = sbr.rel (0) target = $region13
    $region12: #{tpu_custom_call.1} parent=1 // pred_region
      _
    $region13: #{tpu_custom_call.1} parent=1 // pred_fallthru
      _
    // Predicated region
    $region14: #{tpu_custom_call.1} parent=1 // pred_check
      _
    $region15: #{tpu_custom_call.1} parent=1 // pred_check_branch
      %44 = sbr.rel (0) target = $region17
    $region16: #{tpu_custom_call.1} parent=1 // pred_region
      _
    $region17: #{tpu_custom_call.1} parent=1 // pred_fallthru
      _
    // Predicated region
    $region18: #{tpu_custom_call.1} parent=1 // pred_check
      _
    $region19: #{tpu_custom_call.1} parent=1 // pred_check_branch
      %46 = sbr.rel (0) target = $region21
    $region20: #{tpu_custom_call.1} parent=1 // pred_region
      _
    $region21: #{tpu_custom_call.1} parent=1 // pred_fallthru
      _
    // Predicated region
    $region22: #{tpu_custom_call.1} parent=1 // pred_check
      _
    $region23: #{tpu_custom_call.1} parent=1 // pred_check_branch
      %48 = sbr.rel (0) target = $region25
    $region24: #{tpu_custom_call.1} parent=1 // pred_region
      _
    $region25: #{tpu_custom_call.1} parent=1 // pred_fallthru
      _
    // Predicated region
    $region26: #{tpu_custom_call.1} parent=1 // pred_check
      _
    $region27: #{tpu_custom_call.1} parent=1 // pred_check_branch
      %50 = sbr.rel (0) target = $region29
    $region28: #{tpu_custom_call.1} parent=1 // pred_region
      _
    $region29: #{tpu_custom_call.1} parent=1 // pred_fallthru
      _
    // Predicated region
    $region30: #{tpu_custom_call.1} parent=1 // pred_check
      _
    $region31: #{tpu_custom_call.1} parent=1 // pred_check_branch
      %52 = sbr.rel (0) target = $region33
    $region32: #{tpu_custom_call.1} parent=1 // pred_region
      _
    $region33: #{tpu_custom_call.1} parent=1 // pred_fallthru
      _
    // Predicated region
    $region34: #{tpu_custom_call.1} parent=1 // pred_check
      _
    $region35: #{tpu_custom_call.1} parent=1 // pred_check_branch
      %54 = sbr.rel (0) target = $region37
    $region36: #{tpu_custom_call.1} parent=1 // pred_region
      _
    $region37: #{tpu_custom_call.1} parent=1 // pred_fallthru
      _
    // Predicated region
    $region38: #{tpu_custom_call.1} parent=1 // pred_check
      _
    $region39: #{tpu_custom_call.1} parent=1 // pred_check_branch
      %56 = sbr.rel (0) target = $region41
    $region40: #{tpu_custom_call.1} parent=1 // pred_region
      %57 = dma.done [#allocation3], 256
    $region41: #{tpu_custom_call.1} parent=1 // pred_fallthru
      _
    // Predicated region
    $region42: #{tpu_custom_call.1} parent=1 // pred_check
      _
    $region43: #{tpu_custom_call.1} parent=1 // pred_check_branch
      %59 = sbr.rel (0) target = $region45
    $region44: #{tpu_custom_call.1} parent=1 // pred_region
      %60 = dma.done [#allocation6], 256
    $region45: #{tpu_custom_call.1} parent=1 // pred_fallthru
      _
    %v61 = vld [vmem:[#allocation2] sm:$0xff]
    %v62 = vld [vmem:[#allocation2 + $0x8] sm:$0xff]
    %v63 = vld [vmem:[#allocation5] sm:$0xff]
    %v64 = vld [vmem:[#allocation5 + $0x8] sm:$0xff]
    %vm65 = vcmp.eq.f32.partialorder %v63, 0.0
    %vm66 = vcmp.eq.f32.partialorder %v64, 0.0
    %v67 = vsel %vm65, -1e+09, 0.0
    %v68 = vsel %vm66, -1e+09, 0.0
    %v69 = vld [vmem:[%s2] sm:$0xff]
    %v70 = vld [vmem:[%s2 + $0x8] sm:$0xff]
    %v71 = vld [vmem:[%s2 + $0x10] sm:$0xff]
    %v72 = vld [vmem:[%s2 + $0x18] sm:$0xff]
    %v73 = vld [vmem:[%s3] sm:$0x1]
    %v74 = vld [vmem:[%s4] sm:$0xff]
    %v75 = vld [vmem:[%s4 + $0x8] sm:$0xff]
    %v76 = vld [vmem:[%s4 + $0x10] sm:$0xff]
    %v77 = vld [vmem:[%s4 + $0x18] sm:$0xff]
    %v78 = vld [vmem:[%s5] sm:$0xff]
    %v79 = vld [vmem:[%s5 + $0x8] sm:$0xff]
    %v80 = vld [vmem:[%s5 + $0x10] sm:$0xff]
    %v81 = vld [vmem:[%s5 + $0x18] sm:$0xff]
    %v82 = vld [vmem:[%s6] sm:$0x1]
    %v83 = vld [vmem:[%s7] sm:$0xff]
    %v84 = vld [vmem:[%s7 + $0x8] sm:$0xff]
    %v85 = vld [vmem:[%s7 + $0x10] sm:$0xff]
    %v86 = vld [vmem:[%s7 + $0x18] sm:$0xff]
    %v87 = vld [vmem:[%s7 + $0x20] sm:$0xff]
    %v88 = vld [vmem:[%s7 + $0x28] sm:$0xff]
    %v89 = vld [vmem:[%s7 + $0x30] sm:$0xff]
    %v90 = vld [vmem:[%s7 + $0x38] sm:$0xff]
    %v91 = vld [vmem:[%s8] sm:$0x3f]
    %v93 = vlaneseq
    %v94 = vshrl.u32 %v93, 7
    %v95 = vsub.s32 0, %v94
    %v96 = vrot.slane %v73, %v95
    %vm98 = vcmask 261120
    %v100 = vsel %vm98, %v61, 0
    %v103 = vsel %vm98, %v62, 0
    %105 = vmatprep.subr.mxu0 0.0
    %106 = vmatpush1.msra.mxu0 0.0
    %107 = vmatprep.subr.mxu0 0.0
    %108 = vmatpush1.msra.mxu0 0.0
    %109 = vmatprep.subr.mxu0 0.0
    %110 = vmatpush1.msra.mxu0 0.0
    %111 = vmatprep.subr.mxu0 0.0
    %112 = vmatpush1.msra.mxu0 0.0
    %113 = vmatprep.subr.mxu0 0.0
    %114 = vmatpush1.msra.mxu0 0.0
    %115 = vmatprep.subr.mxu0 0.0
    %116 = vmatpush1.msra.mxu0 0.0
    %117 = vmatprep.subr.mxu0 0.0
    %118 = vmatpush1.msra.mxu0 0.0
    %119 = vmatprep.subr.mxu0 0.0
    %120 = vmatpush1.msra.mxu0 0.0
    %121 = vmatprep.subr.mxu0 0.0
    %122 = vmatpush1.msra.mxu0 0.0
    %123 = vmatprep.subr.mxu0 0.0
    %124 = vmatpush1.msra.mxu0 0.0
    %125 = vmatprep.subr.mxu0 0.0
    %126 = vmatpush1.msra.mxu0 0.0
    %127 = vmatprep.subr.mxu0 0.0
    %128 = vmatpush1.msra.mxu0 0.0
    %129 = vmatprep.subr.mxu0 0.0
    %130 = vmatpush1.msra.mxu0 %v72
    %131 = vmatprep.subr.mxu0 0.0
    %132 = vmatpush1.msra.mxu0 %v71
    %133 = vmatprep.subr.mxu0 0.0
    %134 = vmatpush1.msra.mxu0 %v70
    %135 = vmatprep.subr.mxu0 0.0
    %136 = vmatpush1.msra.mxu0 %v69
    %137 = vmatprep.subr.mxu0 0.0
    %138 = vmatpush2.msra.mxu0 0.0
    %139 = vmatprep.subr.mxu0 0.0
    %140 = vmatpush2.msra.mxu0 0.0
    %141 = vmatprep.subr.mxu0 0.0
    %142 = vmatpush2.msra.mxu0 0.0
    %143 = vmatprep.subr.mxu0 0.0
    %144 = vmatpush2.msra.mxu0 0.0
    %145 = vmatprep.subr.mxu0 0.0
    %146 = vmatpush2.msra.mxu0 0.0
    %147 = vmatprep.subr.mxu0 0.0
    %148 = vmatpush2.msra.mxu0 0.0
    %149 = vmatprep.subr.mxu0 0.0
    %150 = vmatpush2.msra.mxu0 0.0
    %151 = vmatprep.subr.mxu0 0.0
    %152 = vmatpush2.msra.mxu0 0.0
    %153 = vmatprep.subr.mxu0 0.0
    %154 = vmatpush2.msra.mxu0 0.0
    %155 = vmatprep.subr.mxu0 0.0
    %156 = vmatpush2.msra.mxu0 0.0
    %157 = vmatprep.subr.mxu0 0.0
    %158 = vmatpush2.msra.mxu0 0.0
    %159 = vmatprep.subr.mxu0 0.0
    %160 = vmatpush2.msra.mxu0 0.0
    %161 = vmatprep.subr.mxu0 0.0
    %162 = vmatpush2.msra.mxu0 0.0
    %163 = vmatprep.subr.mxu0 0.0
    %164 = vmatpush2.msra.mxu0 0.0
    %165 = vmatprep.subr.mxu0 0.0
    %166 = vmatpush2.msra.mxu0 0.0
    %167 = vmatprep.subr.mxu0 0.0
    %168 = vmatpush2.msra.mxu0 0.0
    %169 = vmatprep.mubr.f32.mxu0 0.0
    %170 = vmatmul.mubr.f32.gmra.mxu0 %v100
    %v171 = vpop.f32.mrf.mxu0
    %v172 = vadd.f32 %v96, %v171
    %v173 = vpop.f32.mrf.mxu0
    %174 = vmatprep.mubr.f32.mxu0 0.0
    %175 = vmatmul.mubr.f32.gmra.mxu0 %v103
    %v176 = vpop.f32.mrf.mxu0
    %v177 = vadd.f32 %v96, %v176
    %v178 = vpop.f32.mrf.mxu0
    %179 = vdwg.mxu0
    %181 = vrot.lane.b32.xlu0 %v172, 120
    %v182 = vpop.permute.xlu0 %181
    %183 = vrot.lane.b32.xlu0 %v172, 112
    %v184 = vpop.permute.xlu0 %183
    %185 = vrot.lane.b32.xlu0 %v172, 104
    %v186 = vpop.permute.xlu0 %185
    %188 = vrot.lane.b32.xlu0 %v177, 120
    %v189 = vpop.permute.xlu0 %188
    %190 = vrot.lane.b32.xlu0 %v177, 112
    %v191 = vpop.permute.xlu0 %190
    %192 = vrot.lane.b32.xlu0 %v177, 104
    %v193 = vpop.permute.xlu0 %192
    %194 = vrot.lane.b32.xlu0 %v172, 96
    %v195 = vpop.permute.xlu0 %194
    %vm196 = vcmask 64512
    %v197 = vsel %vm196, %v172, 0
    %v199 = vsel %vm196, %v195, 0
    %201 = vmatprep.subr.mxu0 0.0
    %202 = vmatpush1.xpose.msra.mxu0 0.0
    %203 = vmatprep.subr.mxu0 0.0
    %204 = vmatpush1.xpose.msra.mxu0 0.0
    %205 = vmatprep.subr.mxu0 0.0
    %206 = vmatpush1.xpose.msra.mxu0 0.0
    %207 = vmatprep.subr.mxu0 0.0
    %208 = vmatpush1.xpose.msra.mxu0 0.0
    %209 = vmatprep.subr.mxu0 0.0
    %210 = vmatpush1.xpose.msra.mxu0 0.0
    %211 = vmatprep.subr.mxu0 0.0
    %212 = vmatpush1.xpose.msra.mxu0 0.0
    %213 = vmatprep.subr.mxu0 0.0
    %214 = vmatpush1.xpose.msra.mxu0 0.0
    %215 = vmatprep.subr.mxu0 0.0
    %216 = vmatpush1.xpose.msra.mxu0 0.0
    %217 = vmatprep.subr.mxu0 0.0
    %218 = vmatpush1.xpose.msra.mxu0 0.0
    %219 = vmatprep.subr.mxu0 0.0
    %220 = vmatpush1.xpose.msra.mxu0 0.0
    %221 = vmatprep.subr.mxu0 0.0
    %222 = vmatpush1.xpose.msra.mxu0 0.0
    %223 = vmatprep.subr.mxu0 0.0
    %224 = vmatpush1.xpose.msra.mxu0 0.0
    %225 = vmatprep.subr.mxu0 0.0
    %226 = vmatpush1.xpose.msra.mxu0 0.0
    %227 = vmatprep.subr.mxu0 0.0
    %228 = vmatpush1.xpose.msra.mxu0 0.0
    %229 = vmatprep.subr.mxu0 0.0
    %230 = vmatpush1.xpose.msra.mxu0 0.0
    %231 = vmatprep.subr.mxu0 0.0
    %232 = vmatpush1.xpose.msra.mxu0 %v199
    %233 = vmatprep.subr.mxu0 0.0
    %234 = vmatpush2.xpose.msra.mxu0 0.0
    %235 = vmatprep.subr.mxu0 0.0
    %236 = vmatpush2.xpose.msra.mxu0 0.0
    %237 = vmatprep.subr.mxu0 0.0
    %238 = vmatpush2.xpose.msra.mxu0 0.0
    %239 = vmatprep.subr.mxu0 0.0
    %240 = vmatpush2.xpose.msra.mxu0 0.0
    %241 = vmatprep.subr.mxu0 0.0
    %242 = vmatpush2.xpose.msra.mxu0 0.0
    %243 = vmatprep.subr.mxu0 0.0
    %244 = vmatpush2.xpose.msra.mxu0 0.0
    %245 = vmatprep.subr.mxu0 0.0
    %246 = vmatpush2.xpose.msra.mxu0 0.0
    %247 = vmatprep.subr.mxu0 0.0
    %248 = vmatpush2.xpose.msra.mxu0 0.0
    %249 = vmatprep.subr.mxu0 0.0
    %250 = vmatpush2.xpose.msra.mxu0 0.0
    %251 = vmatprep.subr.mxu0 0.0
    %252 = vmatpush2.xpose.msra.mxu0 0.0
    %253 = vmatprep.subr.mxu0 0.0
    %254 = vmatpush2.xpose.msra.mxu0 0.0
    %255 = vmatprep.subr.mxu0 0.0
    %256 = vmatpush2.xpose.msra.mxu0 0.0
    %257 = vmatprep.subr.mxu0 0.0
    %258 = vmatpush2.xpose.msra.mxu0 0.0
    %259 = vmatprep.subr.mxu0 0.0
    %260 = vmatpush2.xpose.msra.mxu0 0.0
    %261 = vmatprep.subr.mxu0 0.0
    %262 = vmatpush2.xpose.msra.mxu0 0.0
    %263 = vmatprep.subr.mxu0 0.0
    %264 = vmatpush2.xpose.msra.mxu0 0.0
    %265 = vmatprep.mubr.f32.mxu0 0.0
    %266 = vmatmul.mubr.f32.gmra.mxu0 %v197
    %v267 = vpop.f32.mrf.mxu0
    %v268 = vadd.f32 0.0, %v267
    %v269 = vpop.f32.mrf.mxu0
    %270 = vdwg.mxu0
    %271 = vrot.lane.b32.xlu0 %v182, 96
    %v272 = vpop.permute.xlu0 %271
    %v273 = vsel %vm196, %v182, 0
    %v275 = vsel %vm196, %v272, 0
    %277 = vmatprep.subr.mxu0 0.0
    %278 = vmatpush1.xpose.msra.mxu0 0.0
    %279 = vmatprep.subr.mxu0 0.0
    %280 = vmatpush1.xpose.msra.mxu0 0.0
    %281 = vmatprep.subr.mxu0 0.0
    %282 = vmatpush1.xpose.msra.mxu0 0.0
    %283 = vmatprep.subr.mxu0 0.0
    %284 = vmatpush1.xpose.msra.mxu0 0.0
    %285 = vmatprep.subr.mxu0 0.0
    %286 = vmatpush1.xpose.msra.mxu0 0.0
    %287 = vmatprep.subr.mxu0 0.0
    %288 = vmatpush1.xpose.msra.mxu0 0.0
    %289 = vmatprep.subr.mxu0 0.0
    %290 = vmatpush1.xpose.msra.mxu0 0.0
    %291 = vmatprep.subr.mxu0 0.0
    %292 = vmatpush1.xpose.msra.mxu0 0.0
    %293 = vmatprep.subr.mxu0 0.0
    %294 = vmatpush1.xpose.msra.mxu0 0.0
    %295 = vmatprep.subr.mxu0 0.0
    %296 = vmatpush1.xpose.msra.mxu0 0.0
    %297 = vmatprep.subr.mxu0 0.0
    %298 = vmatpush1.xpose.msra.mxu0 0.0
    %299 = vmatprep.subr.mxu0 0.0
    %300 = vmatpush1.xpose.msra.mxu0 0.0
    %301 = vmatprep.subr.mxu0 0.0
    %302 = vmatpush1.xpose.msra.mxu0 0.0
    %303 = vmatprep.subr.mxu0 0.0
    %304 = vmatpush1.xpose.msra.mxu0 0.0
    %305 = vmatprep.subr.mxu0 0.0
    %306 = vmatpush1.xpose.msra.mxu0 0.0
    %307 = vmatprep.subr.mxu0 0.0
    %308 = vmatpush1.xpose.msra.mxu0 %v275
    %309 = vmatprep.subr.mxu0 0.0
    %310 = vmatpush2.xpose.msra.mxu0 0.0
    %311 = vmatprep.subr.mxu0 0.0
    %312 = vmatpush2.xpose.msra.mxu0 0.0
    %313 = vmatprep.subr.mxu0 0.0
    %314 = vmatpush2.xpose.msra.mxu0 0.0
    %315 = vmatprep.subr.mxu0 0.0
    %316 = vmatpush2.xpose.msra.mxu0 0.0
    %317 = vmatprep.subr.mxu0 0.0
    %318 = vmatpush2.xpose.msra.mxu0 0.0
    %319 = vmatprep.subr.mxu0 0.0
    %320 = vmatpush2.xpose.msra.mxu0 0.0
    %321 = vmatprep.subr.mxu0 0.0
    %322 = vmatpush2.xpose.msra.mxu0 0.0
    %323 = vmatprep.subr.mxu0 0.0
    %324 = vmatpush2.xpose.msra.mxu0 0.0
    %325 = vmatprep.subr.mxu0 0.0
    %326 = vmatpush2.xpose.msra.mxu0 0.0
    %327 = vmatprep.subr.mxu0 0.0
    %328 = vmatpush2.xpose.msra.mxu0 0.0
    %329 = vmatprep.subr.mxu0 0.0
    %330 = vmatpush2.xpose.msra.mxu0 0.0
    %331 = vmatprep.subr.mxu0 0.0
    %332 = vmatpush2.xpose.msra.mxu0 0.0
    %333 = vmatprep.subr.mxu0 0.0
    %334 = vmatpush2.xpose.msra.mxu0 0.0
    %335 = vmatprep.subr.mxu0 0.0
    %336 = vmatpush2.xpose.msra.mxu0 0.0
    %337 = vmatprep.subr.mxu0 0.0
    %338 = vmatpush2.xpose.msra.mxu0 0.0
    %339 = vmatprep.subr.mxu0 0.0
    %340 = vmatpush2.xpose.msra.mxu0 0.0
    %341 = vmatprep.mubr.f32.mxu0 0.0
    %342 = vmatmul.mubr.f32.gmra.mxu0 %v273
    %v343 = vpop.f32.mrf.mxu0
    %v344 = vadd.f32 0.0, %v343
    %v345 = vpop.f32.mrf.mxu0
    %346 = vdwg.mxu0
    %347 = vrot.lane.b32.xlu0 %v184, 96
    %v348 = vpop.permute.xlu0 %347
    %v349 = vsel %vm196, %v184, 0
    %v351 = vsel %vm196, %v348, 0
    %353 = vmatprep.subr.mxu0 0.0
    %354 = vmatpush1.xpose.msra.mxu0 0.0
    %355 = vmatprep.subr.mxu0 0.0
    %356 = vmatpush1.xpose.msra.mxu0 0.0
    %357 = vmatprep.subr.mxu0 0.0
    %358 = vmatpush1.xpose.msra.mxu0 0.0
    %359 = vmatprep.subr.mxu0 0.0
    %360 = vmatpush1.xpose.msra.mxu0 0.0
    %361 = vmatprep.subr.mxu0 0.0
    %362 = vmatpush1.xpose.msra.mxu0 0.0
    %363 = vmatprep.subr.mxu0 0.0
    %364 = vmatpush1.xpose.msra.mxu0 0.0
    %365 = vmatprep.subr.mxu0 0.0
    %366 = vmatpush1.xpose.msra.mxu0 0.0
    %367 = vmatprep.subr.mxu0 0.0
    %368 = vmatpush1.xpose.msra.mxu0 0.0
    %369 = vmatprep.subr.mxu0 0.0
    %370 = vmatpush1.xpose.msra.mxu0 0.0
    %371 = vmatprep.subr.mxu0 0.0
    %372 = vmatpush1.xpose.msra.mxu0 0.0
    %373 = vmatprep.subr.mxu0 0.0
    %374 = vmatpush1.xpose.msra.mxu0 0.0
    %375 = vmatprep.subr.mxu0 0.0
    %376 = vmatpush1.xpose.msra.mxu0 0.0
    %377 = vmatprep.subr.mxu0 0.0
    %378 = vmatpush1.xpose.msra.mxu0 0.0
    %379 = vmatprep.subr.mxu0 0.0
    %380 = vmatpush1.xpose.msra.mxu0 0.0
    %381 = vmatprep.subr.mxu0 0.0
    %382 = vmatpush1.xpose.msra.mxu0 0.0
    %383 = vmatprep.subr.mxu0 0.0
    %384 = vmatpush1.xpose.msra.mxu0 %v351
    %385 = vmatprep.subr.mxu0 0.0
    %386 = vmatpush2.xpose.msra.mxu0 0.0
    %387 = vmatprep.subr.mxu0 0.0
    %388 = vmatpush2.xpose.msra.mxu0 0.0
    %389 = vmatprep.subr.mxu0 0.0
    %390 = vmatpush2.xpose.msra.mxu0 0.0
    %391 = vmatprep.subr.mxu0 0.0
    %392 = vmatpush2.xpose.msra.mxu0 0.0
    %393 = vmatprep.subr.mxu0 0.0
    %394 = vmatpush2.xpose.msra.mxu0 0.0
    %395 = vmatprep.subr.mxu0 0.0
    %396 = vmatpush2.xpose.msra.mxu0 0.0
    %397 = vmatprep.subr.mxu0 0.0
    %398 = vmatpush2.xpose.msra.mxu0 0.0
    %399 = vmatprep.subr.mxu0 0.0
    %400 = vmatpush2.xpose.msra.mxu0 0.0
    %401 = vmatprep.subr.mxu0 0.0
    %402 = vmatpush2.xpose.msra.mxu0 0.0
    %403 = vmatprep.subr.mxu0 0.0
    %404 = vmatpush2.xpose.msra.mxu0 0.0
    %405 = vmatprep.subr.mxu0 0.0
    %406 = vmatpush2.xpose.msra.mxu0 0.0
    %407 = vmatprep.subr.mxu0 0.0
    %408 = vmatpush2.xpose.msra.mxu0 0.0
    %409 = vmatprep.subr.mxu0 0.0
    %410 = vmatpush2.xpose.msra.mxu0 0.0
    %411 = vmatprep.subr.mxu0 0.0
    %412 = vmatpush2.xpose.msra.mxu0 0.0
    %413 = vmatprep.subr.mxu0 0.0
    %414 = vmatpush2.xpose.msra.mxu0 0.0
    %415 = vmatprep.subr.mxu0 0.0
    %416 = vmatpush2.xpose.msra.mxu0 0.0
    %417 = vmatprep.mubr.f32.mxu0 0.0
    %418 = vmatmul.mubr.f32.gmra.mxu0 %v349
    %v419 = vpop.f32.mrf.mxu0
    %v420 = vadd.f32 0.0, %v419
    %v421 = vpop.f32.mrf.mxu0
    %422 = vdwg.mxu0
    %423 = vrot.lane.b32.xlu0 %v186, 96
    %v424 = vpop.permute.xlu0 %423
    %v425 = vsel %vm196, %v186, 0
    %v427 = vsel %vm196, %v424, 0
    %429 = vmatprep.subr.mxu0 0.0
    %430 = vmatpush1.xpose.msra.mxu0 0.0
    %431 = vmatprep.subr.mxu0 0.0
    %432 = vmatpush1.xpose.msra.mxu0 0.0
    %433 = vmatprep.subr.mxu0 0.0
    %434 = vmatpush1.xpose.msra.mxu0 0.0
    %435 = vmatprep.subr.mxu0 0.0
    %436 = vmatpush1.xpose.msra.mxu0 0.0
    %437 = vmatprep.subr.mxu0 0.0
    %438 = vmatpush1.xpose.msra.mxu0 0.0
    %439 = vmatprep.subr.mxu0 0.0
    %440 = vmatpush1.xpose.msra.mxu0 0.0
    %441 = vmatprep.subr.mxu0 0.0
    %442 = vmatpush1.xpose.msra.mxu0 0.0
    %443 = vmatprep.subr.mxu0 0.0
    %444 = vmatpush1.xpose.msra.mxu0 0.0
    %445 = vmatprep.subr.mxu0 0.0
    %446 = vmatpush1.xpose.msra.mxu0 0.0
    %447 = vmatprep.subr.mxu0 0.0
    %448 = vmatpush1.xpose.msra.mxu0 0.0
    %449 = vmatprep.subr.mxu0 0.0
    %450 = vmatpush1.xpose.msra.mxu0 0.0
    %451 = vmatprep.subr.mxu0 0.0
    %452 = vmatpush1.xpose.msra.mxu0 0.0
    %453 = vmatprep.subr.mxu0 0.0
    %454 = vmatpush1.xpose.msra.mxu0 0.0
    %455 = vmatprep.subr.mxu0 0.0
    %456 = vmatpush1.xpose.msra.mxu0 0.0
    %457 = vmatprep.subr.mxu0 0.0
    %458 = vmatpush1.xpose.msra.mxu0 0.0
    %459 = vmatprep.subr.mxu0 0.0
    %460 = vmatpush1.xpose.msra.mxu0 %v427
    %461 = vmatprep.subr.mxu0 0.0
    %462 = vmatpush2.xpose.msra.mxu0 0.0
    %463 = vmatprep.subr.mxu0 0.0
    %464 = vmatpush2.xpose.msra.mxu0 0.0
    %465 = vmatprep.subr.mxu0 0.0
    %466 = vmatpush2.xpose.msra.mxu0 0.0
    %467 = vmatprep.subr.mxu0 0.0
    %468 = vmatpush2.xpose.msra.mxu0 0.0
    %469 = vmatprep.subr.mxu0 0.0
    %470 = vmatpush2.xpose.msra.mxu0 0.0
    %471 = vmatprep.subr.mxu0 0.0
    %472 = vmatpush2.xpose.msra.mxu0 0.0
    %473 = vmatprep.subr.mxu0 0.0
    %474 = vmatpush2.xpose.msra.mxu0 0.0
    %475 = vmatprep.subr.mxu0 0.0
    %476 = vmatpush2.xpose.msra.mxu0 0.0
    %477 = vmatprep.subr.mxu0 0.0
    %478 = vmatpush2.xpose.msra.mxu0 0.0
    %479 = vmatprep.subr.mxu0 0.0
    %480 = vmatpush2.xpose.msra.mxu0 0.0
    %481 = vmatprep.subr.mxu0 0.0
    %482 = vmatpush2.xpose.msra.mxu0 0.0
    %483 = vmatprep.subr.mxu0 0.0
    %484 = vmatpush2.xpose.msra.mxu0 0.0
    %485 = vmatprep.subr.mxu0 0.0
    %486 = vmatpush2.xpose.msra.mxu0 0.0
    %487 = vmatprep.subr.mxu0 0.0
    %488 = vmatpush2.xpose.msra.mxu0 0.0
    %489 = vmatprep.subr.mxu0 0.0
    %490 = vmatpush2.xpose.msra.mxu0 0.0
    %491 = vmatprep.subr.mxu0 0.0
    %492 = vmatpush2.xpose.msra.mxu0 0.0
    %493 = vmatprep.mubr.f32.mxu0 0.0
    %494 = vmatmul.mubr.f32.gmra.mxu0 %v425
    %v495 = vpop.f32.mrf.mxu0
    %v496 = vadd.f32 0.0, %v495
    %v497 = vpop.f32.mrf.mxu0
    %498 = vdwg.mxu0
    %499 = vrot.lane.b32.xlu0 %v177, 96
    %v500 = vpop.permute.xlu0 %499
    %v501 = vsel %vm196, %v177, 0
    %v503 = vsel %vm196, %v500, 0
    %505 = vmatprep.subr.mxu0 0.0
    %506 = vmatpush1.xpose.msra.mxu0 0.0
    %507 = vmatprep.subr.mxu0 0.0
    %508 = vmatpush1.xpose.msra.mxu0 0.0
    %509 = vmatprep.subr.mxu0 0.0
    %510 = vmatpush1.xpose.msra.mxu0 0.0
    %511 = vmatprep.subr.mxu0 0.0
    %512 = vmatpush1.xpose.msra.mxu0 0.0
    %513 = vmatprep.subr.mxu0 0.0
    %514 = vmatpush1.xpose.msra.mxu0 0.0
    %515 = vmatprep.subr.mxu0 0.0
    %516 = vmatpush1.xpose.msra.mxu0 0.0
    %517 = vmatprep.subr.mxu0 0.0
    %518 = vmatpush1.xpose.msra.mxu0 0.0
    %519 = vmatprep.subr.mxu0 0.0
    %520 = vmatpush1.xpose.msra.mxu0 0.0
    %521 = vmatprep.subr.mxu0 0.0
    %522 = vmatpush1.xpose.msra.mxu0 0.0
    %523 = vmatprep.subr.mxu0 0.0
    %524 = vmatpush1.xpose.msra.mxu0 0.0
    %525 = vmatprep.subr.mxu0 0.0
    %526 = vmatpush1.xpose.msra.mxu0 0.0
    %527 = vmatprep.subr.mxu0 0.0
    %528 = vmatpush1.xpose.msra.mxu0 0.0
    %529 = vmatprep.subr.mxu0 0.0
    %530 = vmatpush1.xpose.msra.mxu0 0.0
    %531 = vmatprep.subr.mxu0 0.0
    %532 = vmatpush1.xpose.msra.mxu0 0.0
    %533 = vmatprep.subr.mxu0 0.0
    %534 = vmatpush1.xpose.msra.mxu0 0.0
    %535 = vmatprep.subr.mxu0 0.0
    %536 = vmatpush1.xpose.msra.mxu0 %v503
    %537 = vmatprep.subr.mxu0 0.0
    %538 = vmatpush2.xpose.msra.mxu0 0.0
    %539 = vmatprep.subr.mxu0 0.0
    %540 = vmatpush2.xpose.msra.mxu0 0.0
    %541 = vmatprep.subr.mxu0 0.0
    %542 = vmatpush2.xpose.msra.mxu0 0.0
    %543 = vmatprep.subr.mxu0 0.0
    %544 = vmatpush2.xpose.msra.mxu0 0.0
    %545 = vmatprep.subr.mxu0 0.0
    %546 = vmatpush2.xpose.msra.mxu0 0.0
    %547 = vmatprep.subr.mxu0 0.0
    %548 = vmatpush2.xpose.msra.mxu0 0.0
    %549 = vmatprep.subr.mxu0 0.0
    %550 = vmatpush2.xpose.msra.mxu0 0.0
    %551 = vmatprep.subr.mxu0 0.0
    %552 = vmatpush2.xpose.msra.mxu0 0.0
    %553 = vmatprep.subr.mxu0 0.0
    %554 = vmatpush2.xpose.msra.mxu0 0.0
    %555 = vmatprep.subr.mxu0 0.0
    %556 = vmatpush2.xpose.msra.mxu0 0.0
    %557 = vmatprep.subr.mxu0 0.0
    %558 = vmatpush2.xpose.msra.mxu0 0.0
    %559 = vmatprep.subr.mxu0 0.0
    %560 = vmatpush2.xpose.msra.mxu0 0.0
    %561 = vmatprep.subr.mxu0 0.0
    %562 = vmatpush2.xpose.msra.mxu0 0.0
    %563 = vmatprep.subr.mxu0 0.0
    %564 = vmatpush2.xpose.msra.mxu0 0.0
    %565 = vmatprep.subr.mxu0 0.0
    %566 = vmatpush2.xpose.msra.mxu0 0.0
    %567 = vmatprep.subr.mxu0 0.0
    %568 = vmatpush2.xpose.msra.mxu0 0.0
    %569 = vmatprep.mubr.f32.mxu0 0.0
    %570 = vmatmul.mubr.f32.gmra.mxu0 %v501
    %v571 = vpop.f32.mrf.mxu0
    %v572 = vadd.f32 0.0, %v571
    %v573 = vpop.f32.mrf.mxu0
    %574 = vdwg.mxu0
    %575 = vrot.lane.b32.xlu0 %v189, 96
    %v576 = vpop.permute.xlu0 %575
    %v577 = vsel %vm196, %v189, 0
    %v579 = vsel %vm196, %v576, 0
    %581 = vmatprep.subr.mxu0 0.0
    %582 = vmatpush1.xpose.msra.mxu0 0.0
    %583 = vmatprep.subr.mxu0 0.0
    %584 = vmatpush1.xpose.msra.mxu0 0.0
    %585 = vmatprep.subr.mxu0 0.0
    %586 = vmatpush1.xpose.msra.mxu0 0.0
    %587 = vmatprep.subr.mxu0 0.0
    %588 = vmatpush1.xpose.msra.mxu0 0.0
    %589 = vmatprep.subr.mxu0 0.0
    %590 = vmatpush1.xpose.msra.mxu0 0.0
    %591 = vmatprep.subr.mxu0 0.0
    %592 = vmatpush1.xpose.msra.mxu0 0.0
    %593 = vmatprep.subr.mxu0 0.0
    %594 = vmatpush1.xpose.msra.mxu0 0.0
    %595 = vmatprep.subr.mxu0 0.0
    %596 = vmatpush1.xpose.msra.mxu0 0.0
    %597 = vmatprep.subr.mxu0 0.0
    %598 = vmatpush1.xpose.msra.mxu0 0.0
    %599 = vmatprep.subr.mxu0 0.0
    %600 = vmatpush1.xpose.msra.mxu0 0.0
    %601 = vmatprep.subr.mxu0 0.0
    %602 = vmatpush1.xpose.msra.mxu0 0.0
    %603 = vmatprep.subr.mxu0 0.0
    %604 = vmatpush1.xpose.msra.mxu0 0.0
    %605 = vmatprep.subr.mxu0 0.0
    %606 = vmatpush1.xpose.msra.mxu0 0.0
    %607 = vmatprep.subr.mxu0 0.0
    %608 = vmatpush1.xpose.msra.mxu0 0.0
    %609 = vmatprep.subr.mxu0 0.0
    %610 = vmatpush1.xpose.msra.mxu0 0.0
    %611 = vmatprep.subr.mxu0 0.0
    %612 = vmatpush1.xpose.msra.mxu0 %v579
    %613 = vmatprep.subr.mxu0 0.0
    %614 = vmatpush2.xpose.msra.mxu0 0.0
    %615 = vmatprep.subr.mxu0 0.0
    %616 = vmatpush2.xpose.msra.mxu0 0.0
    %617 = vmatprep.subr.mxu0 0.0
    %618 = vmatpush2.xpose.msra.mxu0 0.0
    %619 = vmatprep.subr.mxu0 0.0
    %620 = vmatpush2.xpose.msra.mxu0 0.0
    %621 = vmatprep.subr.mxu0 0.0
    %622 = vmatpush2.xpose.msra.mxu0 0.0
    %623 = vmatprep.subr.mxu0 0.0
    %624 = vmatpush2.xpose.msra.mxu0 0.0
    %625 = vmatprep.subr.mxu0 0.0
    %626 = vmatpush2.xpose.msra.mxu0 0.0
    %627 = vmatprep.subr.mxu0 0.0
    %628 = vmatpush2.xpose.msra.mxu0 0.0
    %629 = vmatprep.subr.mxu0 0.0
    %630 = vmatpush2.xpose.msra.mxu0 0.0
    %631 = vmatprep.subr.mxu0 0.0
    %632 = vmatpush2.xpose.msra.mxu0 0.0
    %633 = vmatprep.subr.mxu0 0.0
    %634 = vmatpush2.xpose.msra.mxu0 0.0
    %635 = vmatprep.subr.mxu0 0.0
    %636 = vmatpush2.xpose.msra.mxu0 0.0
    %637 = vmatprep.subr.mxu0 0.0
    %638 = vmatpush2.xpose.msra.mxu0 0.0
    %639 = vmatprep.subr.mxu0 0.0
    %640 = vmatpush2.xpose.msra.mxu0 0.0
    %641 = vmatprep.subr.mxu0 0.0
    %642 = vmatpush2.xpose.msra.mxu0 0.0
    %643 = vmatprep.subr.mxu0 0.0
    %644 = vmatpush2.xpose.msra.mxu0 0.0
    %645 = vmatprep.mubr.f32.mxu0 0.0
    %646 = vmatmul.mubr.f32.gmra.mxu0 %v577
    %v647 = vpop.f32.mrf.mxu0
    %v648 = vadd.f32 0.0, %v647
    %v649 = vpop.f32.mrf.mxu0
    %650 = vdwg.mxu0
    %651 = vrot.lane.b32.xlu0 %v191, 96
    %v652 = vpop.permute.xlu0 %651
    %v653 = vsel %vm196, %v191, 0
    %v655 = vsel %vm196, %v652, 0
    %657 = vmatprep.subr.mxu0 0.0
    %658 = vmatpush1.xpose.msra.mxu0 0.0
    %659 = vmatprep.subr.mxu0 0.0
    %660 = vmatpush1.xpose.msra.mxu0 0.0
    %661 = vmatprep.subr.mxu0 0.0
    %662 = vmatpush1.xpose.msra.mxu0 0.0
    %663 = vmatprep.subr.mxu0 0.0
    %664 = vmatpush1.xpose.msra.mxu0 0.0
    %665 = vmatprep.subr.mxu0 0.0
    %666 = vmatpush1.xpose.msra.mxu0 0.0
    %667 = vmatprep.subr.mxu0 0.0
    %668 = vmatpush1.xpose.msra.mxu0 0.0
    %669 = vmatprep.subr.mxu0 0.0
    %670 = vmatpush1.xpose.msra.mxu0 0.0
    %671 = vmatprep.subr.mxu0 0.0
    %672 = vmatpush1.xpose.msra.mxu0 0.0
    %673 = vmatprep.subr.mxu0 0.0
    %674 = vmatpush1.xpose.msra.mxu0 0.0
    %675 = vmatprep.subr.mxu0 0.0
    %676 = vmatpush1.xpose.msra.mxu0 0.0
    %677 = vmatprep.subr.mxu0 0.0
    %678 = vmatpush1.xpose.msra.mxu0 0.0
    %679 = vmatprep.subr.mxu0 0.0
    %680 = vmatpush1.xpose.msra.mxu0 0.0
    %681 = vmatprep.subr.mxu0 0.0
    %682 = vmatpush1.xpose.msra.mxu0 0.0
    %683 = vmatprep.subr.mxu0 0.0
    %684 = vmatpush1.xpose.msra.mxu0 0.0
    %685 = vmatprep.subr.mxu0 0.0
    %686 = vmatpush1.xpose.msra.mxu0 0.0
    %687 = vmatprep.subr.mxu0 0.0
    %688 = vmatpush1.xpose.msra.mxu0 %v655
    %689 = vmatprep.subr.mxu0 0.0
    %690 = vmatpush2.xpose.msra.mxu0 0.0
    %691 = vmatprep.subr.mxu0 0.0
    %692 = vmatpush2.xpose.msra.mxu0 0.0
    %693 = vmatprep.subr.mxu0 0.0
    %694 = vmatpush2.xpose.msra.mxu0 0.0
    %695 = vmatprep.subr.mxu0 0.0
    %696 = vmatpush2.xpose.msra.mxu0 0.0
    %697 = vmatprep.subr.mxu0 0.0
    %698 = vmatpush2.xpose.msra.mxu0 0.0
    %699 = vmatprep.subr.mxu0 0.0
    %700 = vmatpush2.xpose.msra.mxu0 0.0
    %701 = vmatprep.subr.mxu0 0.0
    %702 = vmatpush2.xpose.msra.mxu0 0.0
    %703 = vmatprep.subr.mxu0 0.0
    %704 = vmatpush2.xpose.msra.mxu0 0.0
    %705 = vmatprep.subr.mxu0 0.0
    %706 = vmatpush2.xpose.msra.mxu0 0.0
    %707 = vmatprep.subr.mxu0 0.0
    %708 = vmatpush2.xpose.msra.mxu0 0.0
    %709 = vmatprep.subr.mxu0 0.0
    %710 = vmatpush2.xpose.msra.mxu0 0.0
    %711 = vmatprep.subr.mxu0 0.0
    %712 = vmatpush2.xpose.msra.mxu0 0.0
    %713 = vmatprep.subr.mxu0 0.0
    %714 = vmatpush2.xpose.msra.mxu0 0.0
    %715 = vmatprep.subr.mxu0 0.0
    %716 = vmatpush2.xpose.msra.mxu0 0.0
    %717 = vmatprep.subr.mxu0 0.0
    %718 = vmatpush2.xpose.msra.mxu0 0.0
    %719 = vmatprep.subr.mxu0 0.0
    %720 = vmatpush2.xpose.msra.mxu0 0.0
    %721 = vmatprep.mubr.f32.mxu0 0.0
    %722 = vmatmul.mubr.f32.gmra.mxu0 %v653
    %v723 = vpop.f32.mrf.mxu0
    %v724 = vadd.f32 0.0, %v723
    %v725 = vpop.f32.mrf.mxu0
    %726 = vdwg.mxu0
    %727 = vrot.lane.b32.xlu0 %v193, 96
    %v728 = vpop.permute.xlu0 %727
    %v729 = vsel %vm196, %v193, 0
    %v731 = vsel %vm196, %v728, 0
    %733 = vmatprep.subr.mxu0 0.0
    %734 = vmatpush1.xpose.msra.mxu0 0.0
    %735 = vmatprep.subr.mxu0 0.0
    %736 = vmatpush1.xpose.msra.mxu0 0.0
    %737 = vmatprep.subr.mxu0 0.0
    %738 = vmatpush1.xpose.msra.mxu0 0.0
    %739 = vmatprep.subr.mxu0 0.0
    %740 = vmatpush1.xpose.msra.mxu0 0.0
    %741 = vmatprep.subr.mxu0 0.0
    %742 = vmatpush1.xpose.msra.mxu0 0.0
    %743 = vmatprep.subr.mxu0 0.0
    %744 = vmatpush1.xpose.msra.mxu0 0.0
    %745 = vmatprep.subr.mxu0 0.0
    %746 = vmatpush1.xpose.msra.mxu0 0.0
    %747 = vmatprep.subr.mxu0 0.0
    %748 = vmatpush1.xpose.msra.mxu0 0.0
    %749 = vmatprep.subr.mxu0 0.0
    %750 = vmatpush1.xpose.msra.mxu0 0.0
    %751 = vmatprep.subr.mxu0 0.0
    %752 = vmatpush1.xpose.msra.mxu0 0.0
    %753 = vmatprep.subr.mxu0 0.0
    %754 = vmatpush1.xpose.msra.mxu0 0.0
    %755 = vmatprep.subr.mxu0 0.0
    %756 = vmatpush1.xpose.msra.mxu0 0.0
    %757 = vmatprep.subr.mxu0 0.0
    %758 = vmatpush1.xpose.msra.mxu0 0.0
    %759 = vmatprep.subr.mxu0 0.0
    %760 = vmatpush1.xpose.msra.mxu0 0.0
    %761 = vmatprep.subr.mxu0 0.0
    %762 = vmatpush1.xpose.msra.mxu0 0.0
    %763 = vmatprep.subr.mxu0 0.0
    %764 = vmatpush1.xpose.msra.mxu0 %v731
    %765 = vmatprep.subr.mxu0 0.0
    %766 = vmatpush2.xpose.msra.mxu0 0.0
    %767 = vmatprep.subr.mxu0 0.0
    %768 = vmatpush2.xpose.msra.mxu0 0.0
    %769 = vmatprep.subr.mxu0 0.0
    %770 = vmatpush2.xpose.msra.mxu0 0.0
    %771 = vmatprep.subr.mxu0 0.0
    %772 = vmatpush2.xpose.msra.mxu0 0.0
    %773 = vmatprep.subr.mxu0 0.0
    %774 = vmatpush2.xpose.msra.mxu0 0.0
    %775 = vmatprep.subr.mxu0 0.0
    %776 = vmatpush2.xpose.msra.mxu0 0.0
    %777 = vmatprep.subr.mxu0 0.0
    %778 = vmatpush2.xpose.msra.mxu0 0.0
    %779 = vmatprep.subr.mxu0 0.0
    %780 = vmatpush2.xpose.msra.mxu0 0.0
    %781 = vmatprep.subr.mxu0 0.0
    %782 = vmatpush2.xpose.msra.mxu0 0.0
    %783 = vmatprep.subr.mxu0 0.0
    %784 = vmatpush2.xpose.msra.mxu0 0.0
    %785 = vmatprep.subr.mxu0 0.0
    %786 = vmatpush2.xpose.msra.mxu0 0.0
    %787 = vmatprep.subr.mxu0 0.0
    %788 = vmatpush2.xpose.msra.mxu0 0.0
    %789 = vmatprep.subr.mxu0 0.0
    %790 = vmatpush2.xpose.msra.mxu0 0.0
    %791 = vmatprep.subr.mxu0 0.0
    %792 = vmatpush2.xpose.msra.mxu0 0.0
    %793 = vmatprep.subr.mxu0 0.0
    %794 = vmatpush2.xpose.msra.mxu0 0.0
    %795 = vmatprep.subr.mxu0 0.0
    %796 = vmatpush2.xpose.msra.mxu0 0.0
    %797 = vmatprep.mubr.f32.mxu0 0.0
    %798 = vmatmul.mubr.f32.gmra.mxu0 %v729
    %v799 = vpop.f32.mrf.mxu0
    %v800 = vadd.f32 0.0, %v799
    %v801 = vpop.f32.mrf.mxu0
    %802 = vdwg.mxu0
    %v803 = vmul.f32 %v268, 0.35355338
    %v804 = vmul.f32 %v344, 0.35355338
    %v805 = vmul.f32 %v420, 0.35355338
    %v806 = vmul.f32 %v496, 0.35355338
    %v807 = vmul.f32 %v572, 0.35355338
    %v808 = vmul.f32 %v648, 0.35355338
    %v809 = vmul.f32 %v724, 0.35355338
    %v810 = vmul.f32 %v800, 0.35355338
    %v811 = vadd.f32 %v803, %v67
    %v812 = vadd.f32 %v804, %v67
    %v813 = vadd.f32 %v805, %v67
    %v814 = vadd.f32 %v806, %v67
    %v815 = vadd.f32 %v807, %v68
    %v816 = vadd.f32 %v808, %v68
    %v817 = vadd.f32 %v809, %v68
    %v818 = vadd.f32 %v810, %v68
    %v819 = vsel %vm196, %v811, -inf
    %820 = vmax.xlane.f32.xlu0 %v819
    %v821 = vpop.xlane.xlu0 %820
    %v822 = vsel %vm196, %v812, -inf
    %823 = vmax.xlane.f32.xlu0 %v822
    %v824 = vpop.xlane.xlu0 %823
    %v825 = vsel %vm196, %v813, -inf
    %826 = vmax.xlane.f32.xlu0 %v825
    %v827 = vpop.xlane.xlu0 %826
    %v828 = vsel %vm196, %v814, -inf
    %829 = vmax.xlane.f32.xlu0 %v828
    %v830 = vpop.xlane.xlu0 %829
    %v831 = vsel %vm196, %v815, -inf
    %832 = vmax.xlane.f32.xlu0 %v831
    %v833 = vpop.xlane.xlu0 %832
    %v834 = vsel %vm196, %v816, -inf
    %835 = vmax.xlane.f32.xlu0 %v834
    %v836 = vpop.xlane.xlu0 %835
    %v837 = vsel %vm196, %v817, -inf
    %838 = vmax.xlane.f32.xlu0 %v837
    %v839 = vpop.xlane.xlu0 %838
    %v840 = vsel %vm196, %v818, -inf
    %841 = vmax.xlane.f32.xlu0 %v840
    %v842 = vpop.xlane.xlu0 %841
    %v843 = vsub.f32 %v811, %v821
    %v844 = vsub.f32 %v812, %v824
    %v845 = vsub.f32 %v813, %v827
    %v846 = vsub.f32 %v814, %v830
    %v847 = vsub.f32 %v815, %v833
    %v848 = vsub.f32 %v816, %v836
    %v849 = vsub.f32 %v817, %v839
    %v850 = vsub.f32 %v818, %v842
    %v851 = vmul.f32 %v843, 1.442695
    %v852 = vpow.pop %v851
    %v853 = vmul.f32 %v844, 1.442695
    %v854 = vpow.pop %v853
    %v855 = vmul.f32 %v845, 1.442695
    %v856 = vpow.pop %v855
    %v857 = vmul.f32 %v846, 1.442695
    %v858 = vpow.pop %v857
    %v859 = vmul.f32 %v847, 1.442695
    %v860 = vpow.pop %v859
    %v861 = vmul.f32 %v848, 1.442695
    %v862 = vpow.pop %v861
    %v863 = vmul.f32 %v849, 1.442695
    %v864 = vpow.pop %v863
    %v865 = vmul.f32 %v850, 1.442695
    %v866 = vpow.pop %v865
    %v867 = vsel %vm196, %v852, 0.0
    %868 = vadd.xlane.f32.xlu0 %v867
    %v869 = vpop.xlane.xlu0 %868
    %v870 = vsel %vm196, %v854, 0.0
    %871 = vadd.xlane.f32.xlu0 %v870
    %v872 = vpop.xlane.xlu0 %871
    %v873 = vsel %vm196, %v856, 0.0
    %874 = vadd.xlane.f32.xlu0 %v873
    %v875 = vpop.xlane.xlu0 %874
    %v876 = vsel %vm196, %v858, 0.0
    %877 = vadd.xlane.f32.xlu0 %v876
    %v878 = vpop.xlane.xlu0 %877
    %v879 = vsel %vm196, %v860, 0.0
    %880 = vadd.xlane.f32.xlu0 %v879
    %v881 = vpop.xlane.xlu0 %880
    %v882 = vsel %vm196, %v862, 0.0
    %883 = vadd.xlane.f32.xlu0 %v882
    %v884 = vpop.xlane.xlu0 %883
    %v885 = vsel %vm196, %v864, 0.0
    %886 = vadd.xlane.f32.xlu0 %v885
    %v887 = vpop.xlane.xlu0 %886
    %v888 = vsel %vm196, %v866, 0.0
    %889 = vadd.xlane.f32.xlu0 %v888
    %v890 = vpop.xlane.xlu0 %889
    %v891 = vrcp.pop %v869
    %v892 = vrcp.pop %v872
    %v893 = vrcp.pop %v875
    %v894 = vrcp.pop %v878
    %v895 = vrcp.pop %v881
    %v896 = vrcp.pop %v884
    %v897 = vrcp.pop %v887
    %v898 = vrcp.pop %v890
    %v899 = vmul.f32 %v852, %v891
    %v900 = vmul.f32 %v854, %v892
    %v901 = vmul.f32 %v856, %v893
    %v902 = vmul.f32 %v858, %v894
    %v903 = vmul.f32 %v860, %v895
    %v904 = vmul.f32 %v862, %v896
    %v905 = vmul.f32 %v864, %v897
    %v906 = vmul.f32 %v866, %v898
    %907 = vrot.lane.b32.xlu0 %v172, 64
    %v908 = vpop.permute.xlu0 %907
    %v911 = vsel %vm196, %v899, 0
    %913 = vmatprep.subr.mxu0 0.0
    %914 = vmatpush1.msra.mxu0 0.0
    %915 = vmatprep.subr.mxu0 0.0
    %916 = vmatpush1.msra.mxu0 0.0
    %917 = vmatprep.subr.mxu0 0.0
    %918 = vmatpush1.msra.mxu0 0.0
    %919 = vmatprep.subr.mxu0 0.0
    %920 = vmatpush1.msra.mxu0 0.0
    %921 = vmatprep.subr.mxu0 0.0
    %922 = vmatpush1.msra.mxu0 0.0
    %923 = vmatprep.subr.mxu0 0.0
    %924 = vmatpush1.msra.mxu0 0.0
    %925 = vmatprep.subr.mxu0 0.0
    %926 = vmatpush1.msra.mxu0 0.0
    %927 = vmatprep.subr.mxu0 0.0
    %928 = vmatpush1.msra.mxu0 0.0
    %929 = vmatprep.subr.mxu0 0.0
    %930 = vmatpush1.msra.mxu0 0.0
    %931 = vmatprep.subr.mxu0 0.0
    %932 = vmatpush1.msra.mxu0 0.0
    %933 = vmatprep.subr.mxu0 0.0
    %934 = vmatpush1.msra.mxu0 0.0
    %935 = vmatprep.subr.mxu0 0.0
    %936 = vmatpush1.msra.mxu0 0.0
    %937 = vmatprep.subr.mxu0 0.0
    %938 = vmatpush1.msra.mxu0 0.0
    %939 = vmatprep.subr.mxu0 0.0
    %940 = vmatpush1.msra.mxu0 0.0
    %941 = vmatprep.subr.mxu0 0.0
    %942 = vmatpush1.msra.mxu0 0.0
    %943 = vmatprep.subr.mxu0 0.0
    %944 = vmatpush1.msra.mxu0 %v908
    %945 = vmatprep.subr.mxu0 0.0
    %946 = vmatpush2.msra.mxu0 0.0
    %947 = vmatprep.subr.mxu0 0.0
    %948 = vmatpush2.msra.mxu0 0.0
    %949 = vmatprep.subr.mxu0 0.0
    %950 = vmatpush2.msra.mxu0 0.0
    %951 = vmatprep.subr.mxu0 0.0
    %952 = vmatpush2.msra.mxu0 0.0
    %953 = vmatprep.subr.mxu0 0.0
    %954 = vmatpush2.msra.mxu0 0.0
    %955 = vmatprep.subr.mxu0 0.0
    %956 = vmatpush2.msra.mxu0 0.0
    %957 = vmatprep.subr.mxu0 0.0
    %958 = vmatpush2.msra.mxu0 0.0
    %959 = vmatprep.subr.mxu0 0.0
    %960 = vmatpush2.msra.mxu0 0.0
    %961 = vmatprep.subr.mxu0 0.0
    %962 = vmatpush2.msra.mxu0 0.0
    %963 = vmatprep.subr.mxu0 0.0
    %964 = vmatpush2.msra.mxu0 0.0
    %965 = vmatprep.subr.mxu0 0.0
    %966 = vmatpush2.msra.mxu0 0.0
    %967 = vmatprep.subr.mxu0 0.0
    %968 = vmatpush2.msra.mxu0 0.0
    %969 = vmatprep.subr.mxu0 0.0
    %970 = vmatpush2.msra.mxu0 0.0
    %971 = vmatprep.subr.mxu0 0.0
    %972 = vmatpush2.msra.mxu0 0.0
    %973 = vmatprep.subr.mxu0 0.0
    %974 = vmatpush2.msra.mxu0 0.0
    %975 = vmatprep.subr.mxu0 0.0
    %976 = vmatpush2.msra.mxu0 0.0
    %977 = vmatprep.mubr.f32.mxu0 0.0
    %978 = vmatmul.mubr.f32.gmra.mxu0 %v911
    %v979 = vpop.f32.mrf.mxu0
    %v980 = vadd.f32 0.0, %v979
    %v981 = vpop.f32.mrf.mxu0
    %982 = vdwg.mxu0
    %983 = vrot.lane.b32.xlu0 %v182, 64
    %v984 = vpop.permute.xlu0 %983
    %v987 = vsel %vm196, %v900, 0
    %989 = vmatprep.subr.mxu0 0.0
    %990 = vmatpush1.msra.mxu0 0.0
    %991 = vmatprep.subr.mxu0 0.0
    %992 = vmatpush1.msra.mxu0 0.0
    %993 = vmatprep.subr.mxu0 0.0
    %994 = vmatpush1.msra.mxu0 0.0
    %995 = vmatprep.subr.mxu0 0.0
    %996 = vmatpush1.msra.mxu0 0.0
    %997 = vmatprep.subr.mxu0 0.0
    %998 = vmatpush1.msra.mxu0 0.0
    %999 = vmatprep.subr.mxu0 0.0
    %1000 = vmatpush1.msra.mxu0 0.0
    %1001 = vmatprep.subr.mxu0 0.0
    %1002 = vmatpush1.msra.mxu0 0.0
    %1003 = vmatprep.subr.mxu0 0.0
    %1004 = vmatpush1.msra.mxu0 0.0
    %1005 = vmatprep.subr.mxu0 0.0
    %1006 = vmatpush1.msra.mxu0 0.0
    %1007 = vmatprep.subr.mxu0 0.0
    %1008 = vmatpush1.msra.mxu0 0.0
    %1009 = vmatprep.subr.mxu0 0.0
    %1010 = vmatpush1.msra.mxu0 0.0
    %1011 = vmatprep.subr.mxu0 0.0
    %1012 = vmatpush1.msra.mxu0 0.0
    %1013 = vmatprep.subr.mxu0 0.0
    %1014 = vmatpush1.msra.mxu0 0.0
    %1015 = vmatprep.subr.mxu0 0.0
    %1016 = vmatpush1.msra.mxu0 0.0
    %1017 = vmatprep.subr.mxu0 0.0
    %1018 = vmatpush1.msra.mxu0 0.0
    %1019 = vmatprep.subr.mxu0 0.0
    %1020 = vmatpush1.msra.mxu0 %v984
    %1021 = vmatprep.subr.mxu0 0.0
    %1022 = vmatpush2.msra.mxu0 0.0
    %1023 = vmatprep.subr.mxu0 0.0
    %1024 = vmatpush2.msra.mxu0 0.0
    %1025 = vmatprep.subr.mxu0 0.0
    %1026 = vmatpush2.msra.mxu0 0.0
    %1027 = vmatprep.subr.mxu0 0.0
    %1028 = vmatpush2.msra.mxu0 0.0
    %1029 = vmatprep.subr.mxu0 0.0
    %1030 = vmatpush2.msra.mxu0 0.0
    %1031 = vmatprep.subr.mxu0 0.0
    %1032 = vmatpush2.msra.mxu0 0.0
    %1033 = vmatprep.subr.mxu0 0.0
    %1034 = vmatpush2.msra.mxu0 0.0
    %1035 = vmatprep.subr.mxu0 0.0
    %1036 = vmatpush2.msra.mxu0 0.0
    %1037 = vmatprep.subr.mxu0 0.0
    %1038 = vmatpush2.msra.mxu0 0.0
    %1039 = vmatprep.subr.mxu0 0.0
    %1040 = vmatpush2.msra.mxu0 0.0
    %1041 = vmatprep.subr.mxu0 0.0
    %1042 = vmatpush2.msra.mxu0 0.0
    %1043 = vmatprep.subr.mxu0 0.0
    %1044 = vmatpush2.msra.mxu0 0.0
    %1045 = vmatprep.subr.mxu0 0.0
    %1046 = vmatpush2.msra.mxu0 0.0
    %1047 = vmatprep.subr.mxu0 0.0
    %1048 = vmatpush2.msra.mxu0 0.0
    %1049 = vmatprep.subr.mxu0 0.0
    %1050 = vmatpush2.msra.mxu0 0.0
    %1051 = vmatprep.subr.mxu0 0.0
    %1052 = vmatpush2.msra.mxu0 0.0
    %1053 = vmatprep.mubr.f32.mxu0 0.0
    %1054 = vmatmul.mubr.f32.gmra.mxu0 %v987
    %v1055 = vpop.f32.mrf.mxu0
    %v1056 = vadd.f32 0.0, %v1055
    %v1057 = vpop.f32.mrf.mxu0
    %1058 = vdwg.mxu0
    %1059 = vrot.lane.b32.xlu0 %v184, 64
    %v1060 = vpop.permute.xlu0 %1059
    %v1063 = vsel %vm196, %v901, 0
    %1065 = vmatprep.subr.mxu0 0.0
    %1066 = vmatpush1.msra.mxu0 0.0
    %1067 = vmatprep.subr.mxu0 0.0
    %1068 = vmatpush1.msra.mxu0 0.0
    %1069 = vmatprep.subr.mxu0 0.0
    %1070 = vmatpush1.msra.mxu0 0.0
    %1071 = vmatprep.subr.mxu0 0.0
    %1072 = vmatpush1.msra.mxu0 0.0
    %1073 = vmatprep.subr.mxu0 0.0
    %1074 = vmatpush1.msra.mxu0 0.0
    %1075 = vmatprep.subr.mxu0 0.0
    %1076 = vmatpush1.msra.mxu0 0.0
    %1077 = vmatprep.subr.mxu0 0.0
    %1078 = vmatpush1.msra.mxu0 0.0
    %1079 = vmatprep.subr.mxu0 0.0
    %1080 = vmatpush1.msra.mxu0 0.0
    %1081 = vmatprep.subr.mxu0 0.0
    %1082 = vmatpush1.msra.mxu0 0.0
    %1083 = vmatprep.subr.mxu0 0.0
    %1084 = vmatpush1.msra.mxu0 0.0
    %1085 = vmatprep.subr.mxu0 0.0
    %1086 = vmatpush1.msra.mxu0 0.0
    %1087 = vmatprep.subr.mxu0 0.0
    %1088 = vmatpush1.msra.mxu0 0.0
    %1089 = vmatprep.subr.mxu0 0.0
    %1090 = vmatpush1.msra.mxu0 0.0
    %1091 = vmatprep.subr.mxu0 0.0
    %1092 = vmatpush1.msra.mxu0 0.0
    %1093 = vmatprep.subr.mxu0 0.0
    %1094 = vmatpush1.msra.mxu0 0.0
    %1095 = vmatprep.subr.mxu0 0.0
    %1096 = vmatpush1.msra.mxu0 %v1060
    %1097 = vmatprep.subr.mxu0 0.0
    %1098 = vmatpush2.msra.mxu0 0.0
    %1099 = vmatprep.subr.mxu0 0.0
    %1100 = vmatpush2.msra.mxu0 0.0
    %1101 = vmatprep.subr.mxu0 0.0
    %1102 = vmatpush2.msra.mxu0 0.0
    %1103 = vmatprep.subr.mxu0 0.0
    %1104 = vmatpush2.msra.mxu0 0.0
    %1105 = vmatprep.subr.mxu0 0.0
    %1106 = vmatpush2.msra.mxu0 0.0
    %1107 = vmatprep.subr.mxu0 0.0
    %1108 = vmatpush2.msra.mxu0 0.0
    %1109 = vmatprep.subr.mxu0 0.0
    %1110 = vmatpush2.msra.mxu0 0.0
    %1111 = vmatprep.subr.mxu0 0.0
    %1112 = vmatpush2.msra.mxu0 0.0
    %1113 = vmatprep.subr.mxu0 0.0
    %1114 = vmatpush2.msra.mxu0 0.0
    %1115 = vmatprep.subr.mxu0 0.0
    %1116 = vmatpush2.msra.mxu0 0.0
    %1117 = vmatprep.subr.mxu0 0.0
    %1118 = vmatpush2.msra.mxu0 0.0
    %1119 = vmatprep.subr.mxu0 0.0
    %1120 = vmatpush2.msra.mxu0 0.0
    %1121 = vmatprep.subr.mxu0 0.0
    %1122 = vmatpush2.msra.mxu0 0.0
    %1123 = vmatprep.subr.mxu0 0.0
    %1124 = vmatpush2.msra.mxu0 0.0
    %1125 = vmatprep.subr.mxu0 0.0
    %1126 = vmatpush2.msra.mxu0 0.0
    %1127 = vmatprep.subr.mxu0 0.0
    %1128 = vmatpush2.msra.mxu0 0.0
    %1129 = vmatprep.mubr.f32.mxu0 0.0
    %1130 = vmatmul.mubr.f32.gmra.mxu0 %v1063
    %v1131 = vpop.f32.mrf.mxu0
    %v1132 = vadd.f32 0.0, %v1131
    %v1133 = vpop.f32.mrf.mxu0
    %1134 = vdwg.mxu0
    %1135 = vrot.lane.b32.xlu0 %v186, 64
    %v1136 = vpop.permute.xlu0 %1135
    %v1139 = vsel %vm196, %v902, 0
    %1141 = vmatprep.subr.mxu0 0.0
    %1142 = vmatpush1.msra.mxu0 0.0
    %1143 = vmatprep.subr.mxu0 0.0
    %1144 = vmatpush1.msra.mxu0 0.0
    %1145 = vmatprep.subr.mxu0 0.0
    %1146 = vmatpush1.msra.mxu0 0.0
    %1147 = vmatprep.subr.mxu0 0.0
    %1148 = vmatpush1.msra.mxu0 0.0
    %1149 = vmatprep.subr.mxu0 0.0
    %1150 = vmatpush1.msra.mxu0 0.0
    %1151 = vmatprep.subr.mxu0 0.0
    %1152 = vmatpush1.msra.mxu0 0.0
    %1153 = vmatprep.subr.mxu0 0.0
    %1154 = vmatpush1.msra.mxu0 0.0
    %1155 = vmatprep.subr.mxu0 0.0
    %1156 = vmatpush1.msra.mxu0 0.0
    %1157 = vmatprep.subr.mxu0 0.0
    %1158 = vmatpush1.msra.mxu0 0.0
    %1159 = vmatprep.subr.mxu0 0.0
    %1160 = vmatpush1.msra.mxu0 0.0
    %1161 = vmatprep.subr.mxu0 0.0
    %1162 = vmatpush1.msra.mxu0 0.0
    %1163 = vmatprep.subr.mxu0 0.0
    %1164 = vmatpush1.msra.mxu0 0.0
    %1165 = vmatprep.subr.mxu0 0.0
    %1166 = vmatpush1.msra.mxu0 0.0
    %1167 = vmatprep.subr.mxu0 0.0
    %1168 = vmatpush1.msra.mxu0 0.0
    %1169 = vmatprep.subr.mxu0 0.0
    %1170 = vmatpush1.msra.mxu0 0.0
    %1171 = vmatprep.subr.mxu0 0.0
    %1172 = vmatpush1.msra.mxu0 %v1136
    %1173 = vmatprep.subr.mxu0 0.0
    %1174 = vmatpush2.msra.mxu0 0.0
    %1175 = vmatprep.subr.mxu0 0.0
    %1176 = vmatpush2.msra.mxu0 0.0
    %1177 = vmatprep.subr.mxu0 0.0
    %1178 = vmatpush2.msra.mxu0 0.0
    %1179 = vmatprep.subr.mxu0 0.0
    %1180 = vmatpush2.msra.mxu0 0.0
    %1181 = vmatprep.subr.mxu0 0.0
    %1182 = vmatpush2.msra.mxu0 0.0
    %1183 = vmatprep.subr.mxu0 0.0
    %1184 = vmatpush2.msra.mxu0 0.0
    %1185 = vmatprep.subr.mxu0 0.0
    %1186 = vmatpush2.msra.mxu0 0.0
    %1187 = vmatprep.subr.mxu0 0.0
    %1188 = vmatpush2.msra.mxu0 0.0
    %1189 = vmatprep.subr.mxu0 0.0
    %1190 = vmatpush2.msra.mxu0 0.0
    %1191 = vmatprep.subr.mxu0 0.0
    %1192 = vmatpush2.msra.mxu0 0.0
    %1193 = vmatprep.subr.mxu0 0.0
    %1194 = vmatpush2.msra.mxu0 0.0
    %1195 = vmatprep.subr.mxu0 0.0
    %1196 = vmatpush2.msra.mxu0 0.0
    %1197 = vmatprep.subr.mxu0 0.0
    %1198 = vmatpush2.msra.mxu0 0.0
    %1199 = vmatprep.subr.mxu0 0.0
    %1200 = vmatpush2.msra.mxu0 0.0
    %1201 = vmatprep.subr.mxu0 0.0
    %1202 = vmatpush2.msra.mxu0 0.0
    %1203 = vmatprep.subr.mxu0 0.0
    %1204 = vmatpush2.msra.mxu0 0.0
    %1205 = vmatprep.mubr.f32.mxu0 0.0
    %1206 = vmatmul.mubr.f32.gmra.mxu0 %v1139
    %v1207 = vpop.f32.mrf.mxu0
    %v1208 = vadd.f32 0.0, %v1207
    %v1209 = vpop.f32.mrf.mxu0
    %1210 = vdwg.mxu0
    %1211 = vrot.lane.b32.xlu0 %v177, 64
    %v1212 = vpop.permute.xlu0 %1211
    %v1215 = vsel %vm196, %v903, 0
    %1217 = vmatprep.subr.mxu0 0.0
    %1218 = vmatpush1.msra.mxu0 0.0
    %1219 = vmatprep.subr.mxu0 0.0
    %1220 = vmatpush1.msra.mxu0 0.0
    %1221 = vmatprep.subr.mxu0 0.0
    %1222 = vmatpush1.msra.mxu0 0.0
    %1223 = vmatprep.subr.mxu0 0.0
    %1224 = vmatpush1.msra.mxu0 0.0
    %1225 = vmatprep.subr.mxu0 0.0
    %1226 = vmatpush1.msra.mxu0 0.0
    %1227 = vmatprep.subr.mxu0 0.0
    %1228 = vmatpush1.msra.mxu0 0.0
    %1229 = vmatprep.subr.mxu0 0.0
    %1230 = vmatpush1.msra.mxu0 0.0
    %1231 = vmatprep.subr.mxu0 0.0
    %1232 = vmatpush1.msra.mxu0 0.0
    %1233 = vmatprep.subr.mxu0 0.0
    %1234 = vmatpush1.msra.mxu0 0.0
    %1235 = vmatprep.subr.mxu0 0.0
    %1236 = vmatpush1.msra.mxu0 0.0
    %1237 = vmatprep.subr.mxu0 0.0
    %1238 = vmatpush1.msra.mxu0 0.0
    %1239 = vmatprep.subr.mxu0 0.0
    %1240 = vmatpush1.msra.mxu0 0.0
    %1241 = vmatprep.subr.mxu0 0.0
    %1242 = vmatpush1.msra.mxu0 0.0
    %1243 = vmatprep.subr.mxu0 0.0
    %1244 = vmatpush1.msra.mxu0 0.0
    %1245 = vmatprep.subr.mxu0 0.0
    %1246 = vmatpush1.msra.mxu0 0.0
    %1247 = vmatprep.subr.mxu0 0.0
    %1248 = vmatpush1.msra.mxu0 %v1212
    %1249 = vmatprep.subr.mxu0 0.0
    %1250 = vmatpush2.msra.mxu0 0.0
    %1251 = vmatprep.subr.mxu0 0.0
    %1252 = vmatpush2.msra.mxu0 0.0
    %1253 = vmatprep.subr.mxu0 0.0
    %1254 = vmatpush2.msra.mxu0 0.0
    %1255 = vmatprep.subr.mxu0 0.0
    %1256 = vmatpush2.msra.mxu0 0.0
    %1257 = vmatprep.subr.mxu0 0.0
    %1258 = vmatpush2.msra.mxu0 0.0
    %1259 = vmatprep.subr.mxu0 0.0
    %1260 = vmatpush2.msra.mxu0 0.0
    %1261 = vmatprep.subr.mxu0 0.0
    %1262 = vmatpush2.msra.mxu0 0.0
    %1263 = vmatprep.subr.mxu0 0.0
    %1264 = vmatpush2.msra.mxu0 0.0
    %1265 = vmatprep.subr.mxu0 0.0
    %1266 = vmatpush2.msra.mxu0 0.0
    %1267 = vmatprep.subr.mxu0 0.0
    %1268 = vmatpush2.msra.mxu0 0.0
    %1269 = vmatprep.subr.mxu0 0.0
    %1270 = vmatpush2.msra.mxu0 0.0
    %1271 = vmatprep.subr.mxu0 0.0
    %1272 = vmatpush2.msra.mxu0 0.0
    %1273 = vmatprep.subr.mxu0 0.0
    %1274 = vmatpush2.msra.mxu0 0.0
    %1275 = vmatprep.subr.mxu0 0.0
    %1276 = vmatpush2.msra.mxu0 0.0
    %1277 = vmatprep.subr.mxu0 0.0
    %1278 = vmatpush2.msra.mxu0 0.0
    %1279 = vmatprep.subr.mxu0 0.0
    %1280 = vmatpush2.msra.mxu0 0.0
    %1281 = vmatprep.mubr.f32.mxu0 0.0
    %1282 = vmatmul.mubr.f32.gmra.mxu0 %v1215
    %v1283 = vpop.f32.mrf.mxu0
    %v1284 = vadd.f32 0.0, %v1283
    %v1285 = vpop.f32.mrf.mxu0
    %1286 = vdwg.mxu0
    %1287 = vrot.lane.b32.xlu0 %v189, 64
    %v1288 = vpop.permute.xlu0 %1287
    %v1291 = vsel %vm196, %v904, 0
    %1293 = vmatprep.subr.mxu0 0.0
    %1294 = vmatpush1.msra.mxu0 0.0
    %1295 = vmatprep.subr.mxu0 0.0
    %1296 = vmatpush1.msra.mxu0 0.0
    %1297 = vmatprep.subr.mxu0 0.0
    %1298 = vmatpush1.msra.mxu0 0.0
    %1299 = vmatprep.subr.mxu0 0.0
    %1300 = vmatpush1.msra.mxu0 0.0
    %1301 = vmatprep.subr.mxu0 0.0
    %1302 = vmatpush1.msra.mxu0 0.0
    %1303 = vmatprep.subr.mxu0 0.0
    %1304 = vmatpush1.msra.mxu0 0.0
    %1305 = vmatprep.subr.mxu0 0.0
    %1306 = vmatpush1.msra.mxu0 0.0
    %1307 = vmatprep.subr.mxu0 0.0
    %1308 = vmatpush1.msra.mxu0 0.0
    %1309 = vmatprep.subr.mxu0 0.0
    %1310 = vmatpush1.msra.mxu0 0.0
    %1311 = vmatprep.subr.mxu0 0.0
    %1312 = vmatpush1.msra.mxu0 0.0
    %1313 = vmatprep.subr.mxu0 0.0
    %1314 = vmatpush1.msra.mxu0 0.0
    %1315 = vmatprep.subr.mxu0 0.0
    %1316 = vmatpush1.msra.mxu0 0.0
    %1317 = vmatprep.subr.mxu0 0.0
    %1318 = vmatpush1.msra.mxu0 0.0
    %1319 = vmatprep.subr.mxu0 0.0
    %1320 = vmatpush1.msra.mxu0 0.0
    %1321 = vmatprep.subr.mxu0 0.0
    %1322 = vmatpush1.msra.mxu0 0.0
    %1323 = vmatprep.subr.mxu0 0.0
    %1324 = vmatpush1.msra.mxu0 %v1288
    %1325 = vmatprep.subr.mxu0 0.0
    %1326 = vmatpush2.msra.mxu0 0.0
    %1327 = vmatprep.subr.mxu0 0.0
    %1328 = vmatpush2.msra.mxu0 0.0
    %1329 = vmatprep.subr.mxu0 0.0
    %1330 = vmatpush2.msra.mxu0 0.0
    %1331 = vmatprep.subr.mxu0 0.0
    %1332 = vmatpush2.msra.mxu0 0.0
    %1333 = vmatprep.subr.mxu0 0.0
    %1334 = vmatpush2.msra.mxu0 0.0
    %1335 = vmatprep.subr.mxu0 0.0
    %1336 = vmatpush2.msra.mxu0 0.0
    %1337 = vmatprep.subr.mxu0 0.0
    %1338 = vmatpush2.msra.mxu0 0.0
    %1339 = vmatprep.subr.mxu0 0.0
    %1340 = vmatpush2.msra.mxu0 0.0
    %1341 = vmatprep.subr.mxu0 0.0
    %1342 = vmatpush2.msra.mxu0 0.0
    %1343 = vmatprep.subr.mxu0 0.0
    %1344 = vmatpush2.msra.mxu0 0.0
    %1345 = vmatprep.subr.mxu0 0.0
    %1346 = vmatpush2.msra.mxu0 0.0
    %1347 = vmatprep.subr.mxu0 0.0
    %1348 = vmatpush2.msra.mxu0 0.0
    %1349 = vmatprep.subr.mxu0 0.0
    %1350 = vmatpush2.msra.mxu0 0.0
    %1351 = vmatprep.subr.mxu0 0.0
    %1352 = vmatpush2.msra.mxu0 0.0
    %1353 = vmatprep.subr.mxu0 0.0
    %1354 = vmatpush2.msra.mxu0 0.0
    %1355 = vmatprep.subr.mxu0 0.0
    %1356 = vmatpush2.msra.mxu0 0.0
    %1357 = vmatprep.mubr.f32.mxu0 0.0
    %1358 = vmatmul.mubr.f32.gmra.mxu0 %v1291
    %v1359 = vpop.f32.mrf.mxu0
    %v1360 = vadd.f32 0.0, %v1359
    %v1361 = vpop.f32.mrf.mxu0
    %1362 = vdwg.mxu0
    %1363 = vrot.lane.b32.xlu0 %v191, 64
    %v1364 = vpop.permute.xlu0 %1363
    %v1367 = vsel %vm196, %v905, 0
    %1369 = vmatprep.subr.mxu0 0.0
    %1370 = vmatpush1.msra.mxu0 0.0
    %1371 = vmatprep.subr.mxu0 0.0
    %1372 = vmatpush1.msra.mxu0 0.0
    %1373 = vmatprep.subr.mxu0 0.0
    %1374 = vmatpush1.msra.mxu0 0.0
    %1375 = vmatprep.subr.mxu0 0.0
    %1376 = vmatpush1.msra.mxu0 0.0
    %1377 = vmatprep.subr.mxu0 0.0
    %1378 = vmatpush1.msra.mxu0 0.0
    %1379 = vmatprep.subr.mxu0 0.0
    %1380 = vmatpush1.msra.mxu0 0.0
    %1381 = vmatprep.subr.mxu0 0.0
    %1382 = vmatpush1.msra.mxu0 0.0
    %1383 = vmatprep.subr.mxu0 0.0
    %1384 = vmatpush1.msra.mxu0 0.0
    %1385 = vmatprep.subr.mxu0 0.0
    %1386 = vmatpush1.msra.mxu0 0.0
    %1387 = vmatprep.subr.mxu0 0.0
    %1388 = vmatpush1.msra.mxu0 0.0
    %1389 = vmatprep.subr.mxu0 0.0
    %1390 = vmatpush1.msra.mxu0 0.0
    %1391 = vmatprep.subr.mxu0 0.0
    %1392 = vmatpush1.msra.mxu0 0.0
    %1393 = vmatprep.subr.mxu0 0.0
    %1394 = vmatpush1.msra.mxu0 0.0
    %1395 = vmatprep.subr.mxu0 0.0
    %1396 = vmatpush1.msra.mxu0 0.0
    %1397 = vmatprep.subr.mxu0 0.0
    %1398 = vmatpush1.msra.mxu0 0.0
    %1399 = vmatprep.subr.mxu0 0.0
    %1400 = vmatpush1.msra.mxu0 %v1364
    %1401 = vmatprep.subr.mxu0 0.0
    %1402 = vmatpush2.msra.mxu0 0.0
    %1403 = vmatprep.subr.mxu0 0.0
    %1404 = vmatpush2.msra.mxu0 0.0
    %1405 = vmatprep.subr.mxu0 0.0
    %1406 = vmatpush2.msra.mxu0 0.0
    %1407 = vmatprep.subr.mxu0 0.0
    %1408 = vmatpush2.msra.mxu0 0.0
    %1409 = vmatprep.subr.mxu0 0.0
    %1410 = vmatpush2.msra.mxu0 0.0
    %1411 = vmatprep.subr.mxu0 0.0
    %1412 = vmatpush2.msra.mxu0 0.0
    %1413 = vmatprep.subr.mxu0 0.0
    %1414 = vmatpush2.msra.mxu0 0.0
    %1415 = vmatprep.subr.mxu0 0.0
    %1416 = vmatpush2.msra.mxu0 0.0
    %1417 = vmatprep.subr.mxu0 0.0
    %1418 = vmatpush2.msra.mxu0 0.0
    %1419 = vmatprep.subr.mxu0 0.0
    %1420 = vmatpush2.msra.mxu0 0.0
    %1421 = vmatprep.subr.mxu0 0.0
    %1422 = vmatpush2.msra.mxu0 0.0
    %1423 = vmatprep.subr.mxu0 0.0
    %1424 = vmatpush2.msra.mxu0 0.0
    %1425 = vmatprep.subr.mxu0 0.0
    %1426 = vmatpush2.msra.mxu0 0.0
    %1427 = vmatprep.subr.mxu0 0.0
    %1428 = vmatpush2.msra.mxu0 0.0
    %1429 = vmatprep.subr.mxu0 0.0
    %1430 = vmatpush2.msra.mxu0 0.0
    %1431 = vmatprep.subr.mxu0 0.0
    %1432 = vmatpush2.msra.mxu0 0.0
    %1433 = vmatprep.mubr.f32.mxu0 0.0
    %1434 = vmatmul.mubr.f32.gmra.mxu0 %v1367
    %v1435 = vpop.f32.mrf.mxu0
    %v1436 = vadd.f32 0.0, %v1435
    %v1437 = vpop.f32.mrf.mxu0
    %1438 = vdwg.mxu0
    %1439 = vrot.lane.b32.xlu0 %v193, 64
    %v1440 = vpop.permute.xlu0 %1439
    %v1443 = vsel %vm196, %v906, 0
    %1445 = vmatprep.subr.mxu0 0.0
    %1446 = vmatpush1.msra.mxu0 0.0
    %1447 = vmatprep.subr.mxu0 0.0
    %1448 = vmatpush1.msra.mxu0 0.0
    %1449 = vmatprep.subr.mxu0 0.0
    %1450 = vmatpush1.msra.mxu0 0.0
    %1451 = vmatprep.subr.mxu0 0.0
    %1452 = vmatpush1.msra.mxu0 0.0
    %1453 = vmatprep.subr.mxu0 0.0
    %1454 = vmatpush1.msra.mxu0 0.0
    %1455 = vmatprep.subr.mxu0 0.0
    %1456 = vmatpush1.msra.mxu0 0.0
    %1457 = vmatprep.subr.mxu0 0.0
    %1458 = vmatpush1.msra.mxu0 0.0
    %1459 = vmatprep.subr.mxu0 0.0
    %1460 = vmatpush1.msra.mxu0 0.0
    %1461 = vmatprep.subr.mxu0 0.0
    %1462 = vmatpush1.msra.mxu0 0.0
    %1463 = vmatprep.subr.mxu0 0.0
    %1464 = vmatpush1.msra.mxu0 0.0
    %1465 = vmatprep.subr.mxu0 0.0
    %1466 = vmatpush1.msra.mxu0 0.0
    %1467 = vmatprep.subr.mxu0 0.0
    %1468 = vmatpush1.msra.mxu0 0.0
    %1469 = vmatprep.subr.mxu0 0.0
    %1470 = vmatpush1.msra.mxu0 0.0
    %1471 = vmatprep.subr.mxu0 0.0
    %1472 = vmatpush1.msra.mxu0 0.0
    %1473 = vmatprep.subr.mxu0 0.0
    %1474 = vmatpush1.msra.mxu0 0.0
    %1475 = vmatprep.subr.mxu0 0.0
    %1476 = vmatpush1.msra.mxu0 %v1440
    %1477 = vmatprep.subr.mxu0 0.0
    %1478 = vmatpush2.msra.mxu0 0.0
    %1479 = vmatprep.subr.mxu0 0.0
    %1480 = vmatpush2.msra.mxu0 0.0
    %1481 = vmatprep.subr.mxu0 0.0
    %1482 = vmatpush2.msra.mxu0 0.0
    %1483 = vmatprep.subr.mxu0 0.0
    %1484 = vmatpush2.msra.mxu0 0.0
    %1485 = vmatprep.subr.mxu0 0.0
    %1486 = vmatpush2.msra.mxu0 0.0
    %1487 = vmatprep.subr.mxu0 0.0
    %1488 = vmatpush2.msra.mxu0 0.0
    %1489 = vmatprep.subr.mxu0 0.0
    %1490 = vmatpush2.msra.mxu0 0.0
    %1491 = vmatprep.subr.mxu0 0.0
    %1492 = vmatpush2.msra.mxu0 0.0
    %1493 = vmatprep.subr.mxu0 0.0
    %1494 = vmatpush2.msra.mxu0 0.0
    %1495 = vmatprep.subr.mxu0 0.0
    %1496 = vmatpush2.msra.mxu0 0.0
    %1497 = vmatprep.subr.mxu0 0.0
    %1498 = vmatpush2.msra.mxu0 0.0
    %1499 = vmatprep.subr.mxu0 0.0
    %1500 = vmatpush2.msra.mxu0 0.0
    %1501 = vmatprep.subr.mxu0 0.0
    %1502 = vmatpush2.msra.mxu0 0.0
    %1503 = vmatprep.subr.mxu0 0.0
    %1504 = vmatpush2.msra.mxu0 0.0
    %1505 = vmatprep.subr.mxu0 0.0
    %1506 = vmatpush2.msra.mxu0 0.0
    %1507 = vmatprep.subr.mxu0 0.0
    %1508 = vmatpush2.msra.mxu0 0.0
    %1509 = vmatprep.mubr.f32.mxu0 0.0
    %1510 = vmatmul.mubr.f32.gmra.mxu0 %v1443
    %v1511 = vpop.f32.mrf.mxu0
    %v1512 = vadd.f32 0.0, %v1511
    %v1513 = vpop.f32.mrf.mxu0
    %1514 = vdwg.mxu0
    %1516 = vrot.lane.b32.xlu0 %v1056, 8
    %v1517 = vpop.permute.xlu0 %1516
    %1520 = vrot.lane.b32.xlu0 %v1132, 16
    %v1521 = vpop.permute.xlu0 %1520
    %1524 = vrot.lane.b32.xlu0 %v1208, 24
    %v1525 = vpop.permute.xlu0 %1524
    %v1527 = vsel %vm196, %v980, %v1517
    %vm1528 = vcmask 130048
    %v1529 = vsel %vm1528, %v1527, %v1521
    %vm1530 = vcmask 195584
    %v1531 = vsel %vm1530, %v1529, %v1525
    %1533 = vrot.lane.b32.xlu0 %v1360, 8
    %v1534 = vpop.permute.xlu0 %1533
    %1537 = vrot.lane.b32.xlu0 %v1436, 16
    %v1538 = vpop.permute.xlu0 %1537
    %1541 = vrot.lane.b32.xlu0 %v1512, 24
    %v1542 = vpop.permute.xlu0 %1541
    %v1544 = vsel %vm196, %v1284, %v1534
    %v1545 = vsel %vm1528, %v1544, %v1538
    %v1546 = vsel %vm1530, %v1545, %v1542
    %v1547 = vlaneseq
    %v1548 = vshrl.u32 %v1547, 7
    %v1549 = vsub.s32 0, %v1548
    %v1550 = vrot.slane %v91, %v1549
    %v1552 = vsel %vm98, %v1531, 0
    %v1555 = vsel %vm98, %v1546, 0
    %1557 = vmatprep.subr.mxu0 0.0
    %1558 = vmatpush1.msra.mxu0 0.0
    %1559 = vmatprep.subr.mxu0 0.0
    %1560 = vmatpush1.msra.mxu0 0.0
    %1561 = vmatprep.subr.mxu0 0.0
    %1562 = vmatpush1.msra.mxu0 0.0
    %1563 = vmatprep.subr.mxu0 0.0
    %1564 = vmatpush1.msra.mxu0 0.0
    %1565 = vmatprep.subr.mxu0 0.0
    %1566 = vmatpush1.msra.mxu0 0.0
    %1567 = vmatprep.subr.mxu0 0.0
    %1568 = vmatpush1.msra.mxu0 0.0
    %1569 = vmatprep.subr.mxu0 0.0
    %1570 = vmatpush1.msra.mxu0 0.0
    %1571 = vmatprep.subr.mxu0 0.0
    %1572 = vmatpush1.msra.mxu0 0.0
    %1573 = vmatprep.subr.mxu0 0.0
    %1574 = vmatpush1.msra.mxu0 0.0
    %1575 = vmatprep.subr.mxu0 0.0
    %1576 = vmatpush1.msra.mxu0 0.0
    %1577 = vmatprep.subr.mxu0 0.0
    %1578 = vmatpush1.msra.mxu0 0.0
    %1579 = vmatprep.subr.mxu0 0.0
    %1580 = vmatpush1.msra.mxu0 0.0
    %1581 = vmatprep.subr.mxu0 0.0
    %1582 = vmatpush1.msra.mxu0 %v77
    %1583 = vmatprep.subr.mxu0 0.0
    %1584 = vmatpush1.msra.mxu0 %v76
    %1585 = vmatprep.subr.mxu0 0.0
    %1586 = vmatpush1.msra.mxu0 %v75
    %1587 = vmatprep.subr.mxu0 0.0
    %1588 = vmatpush1.msra.mxu0 %v74
    %1589 = vmatprep.subr.mxu0 0.0
    %1590 = vmatpush2.msra.mxu0 0.0
    %1591 = vmatprep.subr.mxu0 0.0
    %1592 = vmatpush2.msra.mxu0 0.0
    %1593 = vmatprep.subr.mxu0 0.0
    %1594 = vmatpush2.msra.mxu0 0.0
    %1595 = vmatprep.subr.mxu0 0.0
    %1596 = vmatpush2.msra.mxu0 0.0
    %1597 = vmatprep.subr.mxu0 0.0
    %1598 = vmatpush2.msra.mxu0 0.0
    %1599 = vmatprep.subr.mxu0 0.0
    %1600 = vmatpush2.msra.mxu0 0.0
    %1601 = vmatprep.subr.mxu0 0.0
    %1602 = vmatpush2.msra.mxu0 0.0
    %1603 = vmatprep.subr.mxu0 0.0
    %1604 = vmatpush2.msra.mxu0 0.0
    %1605 = vmatprep.subr.mxu0 0.0
    %1606 = vmatpush2.msra.mxu0 0.0
    %1607 = vmatprep.subr.mxu0 0.0
    %1608 = vmatpush2.msra.mxu0 0.0
    %1609 = vmatprep.subr.mxu0 0.0
    %1610 = vmatpush2.msra.mxu0 0.0
    %1611 = vmatprep.subr.mxu0 0.0
    %1612 = vmatpush2.msra.mxu0 0.0
    %1613 = vmatprep.subr.mxu0 0.0
    %1614 = vmatpush2.msra.mxu0 0.0
    %1615 = vmatprep.subr.mxu0 0.0
    %1616 = vmatpush2.msra.mxu0 0.0
    %1617 = vmatprep.subr.mxu0 0.0
    %1618 = vmatpush2.msra.mxu0 0.0
    %1619 = vmatprep.subr.mxu0 0.0
    %1620 = vmatpush2.msra.mxu0 0.0
    %1621 = vmatprep.mubr.f32.mxu0 0.0
    %1622 = vmatmul.mubr.f32.gmra.mxu0 %v1552
    %v1623 = vpop.f32.mrf.mxu0
    %v1624 = vadd.f32 %v1550, %v1623
    %v1625 = vpop.f32.mrf.mxu0
    %1626 = vmatprep.mubr.f32.mxu0 0.0
    %1627 = vmatmul.mubr.f32.gmra.mxu0 %v1555
    %v1628 = vpop.f32.mrf.mxu0
    %v1629 = vadd.f32 %v1550, %v1628
    %v1630 = vpop.f32.mrf.mxu0
    %1631 = vdwg.mxu0
    %v1632 = vadd.f32 %v61, %v1624
    %v1633 = vadd.f32 %v62, %v1629
    %v1634 = vsel %vm98, %v1632, 0.0
    %1635 = vadd.xlane.f32.xlu0 %v1634
    %v1636 = vpop.xlane.xlu0 %1635
    %v1637 = vsel %vm98, %v1633, 0.0
    %1638 = vadd.xlane.f32.xlu0 %v1637
    %v1639 = vpop.xlane.xlu0 %1638
    %v1640 = vrcp.pop 32.0
    %v1641 = vmul.f32 %v1636, %v1640
    %v1642 = vmul.f32 %v1639, %v1640
    %v1643 = vsub.f32 %v1632, %v1641
    %v1644 = vsub.f32 %v1633, %v1642
    %v1645 = vmul.f32 %v1643, %v1643
    %v1646 = vmul.f32 %v1644, %v1644
    %v1647 = vsel %vm98, %v1645, 0.0
    %1648 = vadd.xlane.f32.xlu0 %v1647
    %v1649 = vpop.xlane.xlu0 %1648
    %v1650 = vsel %vm98, %v1646, 0.0
    %1651 = vadd.xlane.f32.xlu0 %v1650
    %v1652 = vpop.xlane.xlu0 %1651
    %v1653 = vmul.f32 %v1649, %v1640
    %v1654 = vmul.f32 %v1652, %v1640
    %v1655 = vadd.f32 %v1653, 1e-05
    %v1656 = vadd.f32 %v1654, 1e-05
    %v1657 = vrsqrt.pop %v1655
    %v1658 = vrsqrt.pop %v1656
    %v1659 = vmul.f32 %v1643, %v1657
    %v1660 = vmul.f32 %v1644, %v1658
    %v1661 = vlaneseq
    %v1662 = vshrl.u32 %v1661, 7
    %v1663 = vsub.s32 2, %v1662
    %v1664 = vrot.slane %v91, %v1663
    %v1665 = vmul.f32 %v1659, %v1664
    %v1666 = vmul.f32 %v1660, %v1664
    %v1667 = vlaneseq
    %v1668 = vshrl.u32 %v1667, 7
    %v1669 = vsub.s32 3, %v1668
    %v1670 = vrot.slane %v91, %v1669
    %v1671 = vadd.f32 %v1665, %v1670
    %v1672 = vadd.f32 %v1666, %v1670
    %v1674 = vlaneseq
    %v1675 = vshrl.u32 %v1674, 7
    %v1676 = vsub.s32 0, %v1675
    %v1677 = vrot.slane %v82, %v1676
    %v1680 = vsel %vm98, %v1671, 0
    %v1683 = vsel %vm98, %v1672, 0
    %1685 = vmatprep.subr.mxu0 0.0
    %1686 = vmatpush1.msra.mxu0 0.0
    %1687 = vmatprep.subr.mxu0 0.0
    %1688 = vmatpush1.msra.mxu0 0.0
    %1689 = vmatprep.subr.mxu0 0.0
    %1690 = vmatpush1.msra.mxu0 0.0
    %1691 = vmatprep.subr.mxu0 0.0
    %1692 = vmatpush1.msra.mxu0 0.0
    %1693 = vmatprep.subr.mxu0 0.0
    %1694 = vmatpush1.msra.mxu0 0.0
    %1695 = vmatprep.subr.mxu0 0.0
    %1696 = vmatpush1.msra.mxu0 0.0
    %1697 = vmatprep.subr.mxu0 0.0
    %1698 = vmatpush1.msra.mxu0 0.0
    %1699 = vmatprep.subr.mxu0 0.0
    %1700 = vmatpush1.msra.mxu0 0.0
    %1701 = vmatprep.subr.mxu0 0.0
    %1702 = vmatpush1.msra.mxu0 0.0
    %1703 = vmatprep.subr.mxu0 0.0
    %1704 = vmatpush1.msra.mxu0 0.0
    %1705 = vmatprep.subr.mxu0 0.0
    %1706 = vmatpush1.msra.mxu0 0.0
    %1707 = vmatprep.subr.mxu0 0.0
    %1708 = vmatpush1.msra.mxu0 0.0
    %1709 = vmatprep.subr.mxu0 0.0
    %1710 = vmatpush1.msra.mxu0 %v81
    %1711 = vmatprep.subr.mxu0 0.0
    %1712 = vmatpush1.msra.mxu0 %v80
    %1713 = vmatprep.subr.mxu0 0.0
    %1714 = vmatpush1.msra.mxu0 %v79
    %1715 = vmatprep.subr.mxu0 0.0
    %1716 = vmatpush1.msra.mxu0 %v78
    %1717 = vmatprep.subr.mxu0 0.0
    %1718 = vmatpush2.msra.mxu0 0.0
    %1719 = vmatprep.subr.mxu0 0.0
    %1720 = vmatpush2.msra.mxu0 0.0
    %1721 = vmatprep.subr.mxu0 0.0
    %1722 = vmatpush2.msra.mxu0 0.0
    %1723 = vmatprep.subr.mxu0 0.0
    %1724 = vmatpush2.msra.mxu0 0.0
    %1725 = vmatprep.subr.mxu0 0.0
    %1726 = vmatpush2.msra.mxu0 0.0
    %1727 = vmatprep.subr.mxu0 0.0
    %1728 = vmatpush2.msra.mxu0 0.0
    %1729 = vmatprep.subr.mxu0 0.0
    %1730 = vmatpush2.msra.mxu0 0.0
    %1731 = vmatprep.subr.mxu0 0.0
    %1732 = vmatpush2.msra.mxu0 0.0
    %1733 = vmatprep.subr.mxu0 0.0
    %1734 = vmatpush2.msra.mxu0 0.0
    %1735 = vmatprep.subr.mxu0 0.0
    %1736 = vmatpush2.msra.mxu0 0.0
    %1737 = vmatprep.subr.mxu0 0.0
    %1738 = vmatpush2.msra.mxu0 0.0
    %1739 = vmatprep.subr.mxu0 0.0
    %1740 = vmatpush2.msra.mxu0 0.0
    %1741 = vmatprep.subr.mxu0 0.0
    %1742 = vmatpush2.msra.mxu0 0.0
    %1743 = vmatprep.subr.mxu0 0.0
    %1744 = vmatpush2.msra.mxu0 0.0
    %1745 = vmatprep.subr.mxu0 0.0
    %1746 = vmatpush2.msra.mxu0 0.0
    %1747 = vmatprep.subr.mxu0 0.0
    %1748 = vmatpush2.msra.mxu0 0.0
    %1749 = vmatprep.mubr.f32.mxu0 0.0
    %1750 = vmatmul.mubr.f32.gmra.mxu0 %v1680
    %v1751 = vpop.f32.mrf.mxu0
    %v1752 = vadd.f32 %v1677, %v1751
    %v1753 = vpop.f32.mrf.mxu0
    %1754 = vmatprep.mubr.f32.mxu0 0.0
    %1755 = vmatmul.mubr.f32.gmra.mxu0 %v1683
    %v1756 = vpop.f32.mrf.mxu0
    %v1757 = vadd.f32 %v1677, %v1756
    %v1758 = vpop.f32.mrf.mxu0
    %1759 = vdwg.mxu0
    %v1760 = vmax.f32 %v1752, 0.0
    %v1761 = vmax.f32 %v1757, 0.0
    %v1762 = vlaneseq
    %v1763 = vshrl.u32 %v1762, 7
    %v1764 = vsub.s32 1, %v1763
    %v1765 = vrot.slane %v91, %v1764
    %vm1766 = vcmask 523264
    %v1768 = vsel %vm1766, %v1760, 0
    %v1771 = vsel %vm1766, %v1761, 0
    %1773 = vmatprep.subr.mxu0 0.0
    %1774 = vmatpush1.msra.mxu0 0.0
    %1775 = vmatprep.subr.mxu0 0.0
    %1776 = vmatpush1.msra.mxu0 0.0
    %1777 = vmatprep.subr.mxu0 0.0
    %1778 = vmatpush1.msra.mxu0 0.0
    %1779 = vmatprep.subr.mxu0 0.0
    %1780 = vmatpush1.msra.mxu0 0.0
    %1781 = vmatprep.subr.mxu0 0.0
    %1782 = vmatpush1.msra.mxu0 0.0
    %1783 = vmatprep.subr.mxu0 0.0
    %1784 = vmatpush1.msra.mxu0 0.0
    %1785 = vmatprep.subr.mxu0 0.0
    %1786 = vmatpush1.msra.mxu0 0.0
    %1787 = vmatprep.subr.mxu0 0.0
    %1788 = vmatpush1.msra.mxu0 0.0
    %1789 = vmatprep.subr.mxu0 0.0
    %1790 = vmatpush1.msra.mxu0 %v90
    %1791 = vmatprep.subr.mxu0 0.0
    %1792 = vmatpush1.msra.mxu0 %v89
    %1793 = vmatprep.subr.mxu0 0.0
    %1794 = vmatpush1.msra.mxu0 %v88
    %1795 = vmatprep.subr.mxu0 0.0
    %1796 = vmatpush1.msra.mxu0 %v87
    %1797 = vmatprep.subr.mxu0 0.0
    %1798 = vmatpush1.msra.mxu0 %v86
    %1799 = vmatprep.subr.mxu0 0.0
    %1800 = vmatpush1.msra.mxu0 %v85
    %1801 = vmatprep.subr.mxu0 0.0
    %1802 = vmatpush1.msra.mxu0 %v84
    %1803 = vmatprep.subr.mxu0 0.0
    %1804 = vmatpush1.msra.mxu0 %v83
    %1805 = vmatprep.subr.mxu0 0.0
    %1806 = vmatpush2.msra.mxu0 0.0
    %1807 = vmatprep.subr.mxu0 0.0
    %1808 = vmatpush2.msra.mxu0 0.0
    %1809 = vmatprep.subr.mxu0 0.0
    %1810 = vmatpush2.msra.mxu0 0.0
    %1811 = vmatprep.subr.mxu0 0.0
    %1812 = vmatpush2.msra.mxu0 0.0
    %1813 = vmatprep.subr.mxu0 0.0
    %1814 = vmatpush2.msra.mxu0 0.0
    %1815 = vmatprep.subr.mxu0 0.0
    %1816 = vmatpush2.msra.mxu0 0.0
    %1817 = vmatprep.subr.mxu0 0.0
    %1818 = vmatpush2.msra.mxu0 0.0
    %1819 = vmatprep.subr.mxu0 0.0
    %1820 = vmatpush2.msra.mxu0 0.0
    %1821 = vmatprep.subr.mxu0 0.0
    %1822 = vmatpush2.msra.mxu0 0.0
    %1823 = vmatprep.subr.mxu0 0.0
    %1824 = vmatpush2.msra.mxu0 0.0
    %1825 = vmatprep.subr.mxu0 0.0
    %1826 = vmatpush2.msra.mxu0 0.0
    %1827 = vmatprep.subr.mxu0 0.0
    %1828 = vmatpush2.msra.mxu0 0.0
    %1829 = vmatprep.subr.mxu0 0.0
    %1830 = vmatpush2.msra.mxu0 0.0
    %1831 = vmatprep.subr.mxu0 0.0
    %1832 = vmatpush2.msra.mxu0 0.0
    %1833 = vmatprep.subr.mxu0 0.0
    %1834 = vmatpush2.msra.mxu0 0.0
    %1835 = vmatprep.subr.mxu0 0.0
    %1836 = vmatpush2.msra.mxu0 0.0
    %1837 = vmatprep.mubr.f32.mxu0 0.0
    %1838 = vmatmul.mubr.f32.gmra.mxu0 %v1768
    %v1839 = vpop.f32.mrf.mxu0
    %v1840 = vadd.f32 %v1765, %v1839
    %v1841 = vpop.f32.mrf.mxu0
    %1842 = vmatprep.mubr.f32.mxu0 0.0
    %1843 = vmatmul.mubr.f32.gmra.mxu0 %v1771
    %v1844 = vpop.f32.mrf.mxu0
    %v1845 = vadd.f32 %v1765, %v1844
    %v1846 = vpop.f32.mrf.mxu0
    %1847 = vdwg.mxu0
    %v1848 = vadd.f32 %v1671, %v1840
    %v1849 = vadd.f32 %v1672, %v1845
    %v1850 = vsel %vm98, %v1848, 0.0
    %1851 = vadd.xlane.f32.xlu0 %v1850
    %v1852 = vpop.xlane.xlu0 %1851
    %v1853 = vsel %vm98, %v1849, 0.0
    %1854 = vadd.xlane.f32.xlu0 %v1853
    %v1855 = vpop.xlane.xlu0 %1854
    %v1856 = vmul.f32 %v1852, %v1640
    %v1857 = vmul.f32 %v1855, %v1640
    %v1858 = vsub.f32 %v1848, %v1856
    %v1859 = vsub.f32 %v1849, %v1857
    %v1860 = vmul.f32 %v1858, %v1858
    %v1861 = vmul.f32 %v1859, %v1859
    %v1862 = vsel %vm98, %v1860, 0.0
    %1863 = vadd.xlane.f32.xlu0 %v1862
    %v1864 = vpop.xlane.xlu0 %1863
    %v1865 = vsel %vm98, %v1861, 0.0
    %1866 = vadd.xlane.f32.xlu0 %v1865
    %v1867 = vpop.xlane.xlu0 %1866
    %v1868 = vmul.f32 %v1864, %v1640
    %v1869 = vmul.f32 %v1867, %v1640
    %v1870 = vadd.f32 %v1868, 1e-05
    %v1871 = vadd.f32 %v1869, 1e-05
    %v1872 = vrsqrt.pop %v1870
    %v1873 = vrsqrt.pop %v1871
    %v1874 = vmul.f32 %v1858, %v1872
    %v1875 = vmul.f32 %v1859, %v1873
    %v1876 = vlaneseq
    %v1877 = vshrl.u32 %v1876, 7
    %v1878 = vsub.s32 4, %v1877
    %v1879 = vrot.slane %v91, %v1878
    %v1880 = vmul.f32 %v1874, %v1879
    %v1881 = vmul.f32 %v1875, %v1879
    %v1882 = vlaneseq
    %v1883 = vshrl.u32 %v1882, 7
    %v1884 = vsub.s32 5, %v1883
    %v1885 = vrot.slane %v91, %v1884
    %v1886 = vadd.f32 %v1880, %v1885
    %v1887 = vadd.f32 %v1881, %v1885
    %1888 = vst.msk [vmem:[#allocation7] sm:$0xff] %vm98, %v1886
    %1889 = vst.msk [vmem:[#allocation7 + $0x8] sm:$0xff] %vm98, %v1887
    // Predicated region
    $region46: #{tpu_custom_call.1} parent=1 // pred_check
      _
    $region47: #{tpu_custom_call.1} parent=1 // pred_check_branch
      %1891 = sbr.rel (0) target = $region49
    $region48: #{tpu_custom_call.1} parent=1 // pred_region
      %s1893 = ssub.s32 256, 256
      %1894 = vsyncadd [#allocation4], %s1893
      %s1895 = sshll.u32 [#allocation7], 4
      %s1896 = int_to_ptr.vmem [resolvable:$true] %s1895
      %1901 = dma.vmem_to_hbm [thread:$0]  %s1896, 256, %s9, [#allocation4], 128, 128, 8
    $region49: #{tpu_custom_call.1} parent=1 // pred_fallthru
      _
    // Predicated region
    $region50: #{tpu_custom_call.1} parent=1 // pred_check
      _
    $region51: #{tpu_custom_call.1} parent=1 // pred_check_branch
      %1903 = sbr.rel (0) target = $region53
    $region52: #{tpu_custom_call.1} parent=1 // pred_region
      %1904 = dma.done [#allocation4], 256
    $region53: #{tpu_custom_call.1} parent=1 // pred_fallthru
      _
    %1905 = vsyncpa [#allocation3], 1
    %1906 = vsyncpa [#allocation6], 1
    %1907 = vsyncpa [#allocation4], 1

</llo_original>
